<compile_context>
chip_gen: v7x
topology: tpu7x:2x2x1
jax: 0.10.0
libtpu: 0.0.40
codegen_flags: <defaults>
</compile_context>

<pallas_src>
import math
from functools import partial

import jax
import jax.numpy as jnp
from jax.experimental import pallas as pl
from jax.experimental.pallas import tpu as pltpu


# ------------------------- fused GRU math (shared) -------------------------

def _gru_math(x, h, w_ru_ref, b_ru_ref, w_o_ref, b_o_ref, feat_dim):
    """DPC ConvGRUCell (kernel_size=1) step.

    cat([x, h]) -> reset/update gates (fused matmul), cat([x, h*r]) -> out gate,
    new_h = h * (1 - u) + o * u   (DPC convrnn convention).
    x, h are f32; matmul operands cast to bf16, accumulation / elementwise in f32.
    """
    xh = jnp.concatenate([x, h], axis=-1).astype(jnp.bfloat16)           # (M, 2F)
    ru = jax.nn.sigmoid(
        jnp.dot(xh, w_ru_ref[...], preferred_element_type=jnp.float32) + b_ru_ref[...])
    r = ru[:, :feat_dim]
    u = ru[:, feat_dim:]
    xhr = jnp.concatenate([x, h * r], axis=-1).astype(jnp.bfloat16)      # (M, 2F)
    o = jnp.tanh(
        jnp.dot(xhr, w_o_ref[...], preferred_element_type=jnp.float32) + b_o_ref[...])
    return h * (1.0 - u) + o * u


# ------------------------- kernel 1: ConvGRU recurrence -------------------------

def _gru_seq_kernel(x_ref, w_ru, b_ru, w_o, b_o, h_out_ref, h_scr, *, feat_dim):
    t = pl.program_id(1)

    @pl.when(t == 0)
    def _():
        h_scr[...] = jnp.zeros_like(h_scr)

    x = jnp.maximum(x_ref[0, 0], 0.0)          # module-level ReLU folded in
    h_new = _gru_math(x, h_scr[...], w_ru, b_ru, w_o, b_o, feat_dim)
    h_scr[...] = h_new
    h_out_ref[0] = h_new.astype(h_out_ref.dtype)


def gru_aggregate(ctx, gp):
    """ctx: (B, T, Mb, F) f32 pre-ReLU features. Returns final hidden (B, Mb, F)."""
    B, T, Mb, F_ = ctx.shape
    return pl.pallas_call(
        partial(_gru_seq_kernel, feat_dim=F_),
        out_shape=jax.ShapeDtypeStruct((B, Mb, F_), jnp.float32),
        grid_spec=pltpu.PrefetchScalarGridSpec(
            num_scalar_prefetch=0,
            grid=(B, T),
            in_specs=[
                pl.BlockSpec((1, 1, Mb, F_), lambda b, t: (b, t, 0, 0)),
                pl.BlockSpec((2 * F_, 2 * F_), lambda b, t: (0, 0)),   # resident
                pl.BlockSpec((1, 2 * F_), lambda b, t: (0, 0)),
                pl.BlockSpec((2 * F_, F_), lambda b, t: (0, 0)),
                pl.BlockSpec((1, F_), lambda b, t: (0, 0)),
            ],
            out_specs=pl.BlockSpec((1, Mb, F_), lambda b, t: (b, 0, 0)),
            scratch_shapes=[pltpu.VMEM((Mb, F_), jnp.float32)],
        ),
        compiler_params=pltpu.CompilerParams(
            dimension_semantics=("parallel", "arbitrary")),
    )(ctx, gp["w_ru"], gp["b_ru"], gp["w_o"], gp["b_o"])


# ------------------------- kernel 2: autoregressive prediction -------------------------

def _pred_seq_kernel(h0_ref, w1, b1, w2, b2, w_ru, b_ru, w_o, b_o,
                     pred_ref, h_scr, *, feat_dim):
    s = pl.program_id(1)

    @pl.when(s == 0)
    def _():
        h_scr[...] = h0_ref[0]

    h = h_scr[...]
    # network_pred: Conv1x1 -> ReLU -> Conv1x1 (fused, bf16 matmul operands)
    ph = jnp.maximum(
        jnp.dot(h.astype(jnp.bfloat16), w1[...],
                preferred_element_type=jnp.float32) + b1[...], 0.0)
    p = jnp.dot(ph.astype(jnp.bfloat16), w2[...],
                preferred_element_type=jnp.float32) + b2[...]
    pred_ref[0, 0] = p.astype(pred_ref.dtype)

    # feed relu(p) back through the GRU (skip the wasted final update)
    @pl.when(s + 1 < pl.num_programs(1))
    def _():
        x = jnp.maximum(p, 0.0)
        h_scr[...] = _gru_math(x, h, w_ru, b_ru, w_o, b_o, feat_dim)


def pred_rollout(h0, pp, gp, pred_step):
    """h0: (B, Mb, F) final GRU hidden. Returns predictions (B, pred_step, Mb, F)."""
    B, Mb, F_ = h0.shape
    return pl.pallas_call(
        partial(_pred_seq_kernel, feat_dim=F_),
        out_shape=jax.ShapeDtypeStruct((B, pred_step, Mb, F_), jnp.float32),
        grid_spec=pltpu.PrefetchScalarGridSpec(
            num_scalar_prefetch=0,
            grid=(B, pred_step),
            in_specs=[
                pl.BlockSpec((1, Mb, F_), lambda b, s: (b, 0, 0)),
                pl.BlockSpec((F_, F_), lambda b, s: (0, 0)),
                pl.BlockSpec((1, F_), lambda b, s: (0, 0)),
                pl.BlockSpec((F_, F_), lambda b, s: (0, 0)),
                pl.BlockSpec((1, F_), lambda b, s: (0, 0)),
                pl.BlockSpec((2 * F_, 2 * F_), lambda b, s: (0, 0)),
                pl.BlockSpec((1, 2 * F_), lambda b, s: (0, 0)),
                pl.BlockSpec((2 * F_, F_), lambda b, s: (0, 0)),
                pl.BlockSpec((1, F_), lambda b, s: (0, 0)),
            ],
            out_specs=pl.BlockSpec((1, 1, Mb, F_), lambda b, s: (b, s, 0, 0)),
            scratch_shapes=[pltpu.VMEM((Mb, F_), jnp.float32)],
        ),
        compiler_params=pltpu.CompilerParams(
            dimension_semantics=("parallel", "arbitrary")),
    )(h0, pp["w1"], pp["b1"], pp["w2"], pp["b2"],
      gp["w_ru"], gp["b_ru"], gp["w_o"], gp["b_o"])


# ------------------------- parameters -------------------------

def init_params(key, in_channels, feature_dim):
    """Deterministic orthogonal weights / zero biases (mirrors _initialize_weights)."""
    F_ = feature_dim
    ortho = jax.nn.initializers.orthogonal()
    k = jax.random.split(key, 6)

    # TODO(synk): select_resnet (2D+3D ResNet backbone) is not provided; stand-in is
    # strided average pooling (XLA glue) + a 1x1x1 channel projection + ReLU.
    backbone_w = ortho(k[0], (F_, in_channels)).T.astype(jnp.float32)   # (C, F)
    backbone_b = jnp.zeros((1, F_), jnp.float32)

    # ConvGRU gate convs: Conv2d(2F -> F, 1x1); weight (F, 2F); input is cat([x, h]),
    # so W.T rows 0:F act on x and rows F:2F act on h (matches DPC ConvGRUCell).
    W_r = ortho(k[1], (F_, 2 * F_)).astype(jnp.float32)
    W_u = ortho(k[2], (F_, 2 * F_)).astype(jnp.float32)
    W_o = ortho(k[3], (F_, 2 * F_)).astype(jnp.float32)
    gru = dict(
        w_ru=jnp.concatenate([W_r.T, W_u.T], axis=1).astype(jnp.bfloat16),  # (2F, 2F)
        b_ru=jnp.zeros((1, 2 * F_), jnp.float32),
        w_o=W_o.T.astype(jnp.bfloat16),                                      # (2F, F)
        b_o=jnp.zeros((1, F_), jnp.float32),
    )

    pred = dict(w1=ortho(k[4], (F_, F_)).T.astype(jnp.bfloat16),
                b1=jnp.zeros((1, F_), jnp.float32),
                w2=ortho(k[5], (F_, F_)).T.astype(jnp.bfloat16),
                b2=jnp.zeros((1, F_), jnp.float32))

    return dict(backbone_w=backbone_w, backbone_b=backbone_b, gru=gru, pred=pred)


# ------------------------- forward -------------------------

def forward(params, block, *, pred_step, feature_dim):
    """block: (B, N, C, SL, H, W) float32 — same layout as the PyTorch module."""
    B, N, C, SL, H, W = block.shape
    F_ = feature_dim
    last_duration = int(math.ceil(SL / 4))
    last_size = int(math.ceil(H / 32))
    Mb = last_size * last_size

    x = block.reshape(B * N, C, SL, H, W)

    # ---- backbone stand-in: temporal /4 and spatial /32 avg-pool (XLA glue) ----
    t_pool = SL // last_duration
    s_pool = H // last_size
    x = x.reshape(B * N, C, last_duration, t_pool, H, W).mean(axis=3)
    x = x.reshape(B * N, C, last_duration, last_size, s_pool,
                  last_size, s_pool).mean(axis=(4, 6))
    x = x.transpose(0, 2, 3, 4, 1)                                    # channels-last

    # 1x1x1 channel projection + ReLU: tiny matmul, left to XLA on purpose
    feat = jnp.maximum(
        x.reshape(-1, C) @ params["backbone_w"] + params["backbone_b"], 0.0)

    # adapt_dim = Identity; F.avg_pool3d(., (last_duration,1,1)) -> temporal mean
    feature = feat.reshape(B, N, last_duration, Mb, F_).mean(axis=2)  # (B, N, Mb, F)

    # args.hyperbolic = False: feature_dist = feature_g = feature
    feature_dist_out = feature[:, N - pred_step:].reshape(B * pred_step * Mb, F_)

    # ---- ConvGRU aggregation over the first N - pred_step timesteps (one kernel) ----
    ctx = feature[:, : N - pred_step]                                 # (B, T, Mb, F)
    hidden = gru_aggregate(ctx, params["gru"])                        # (B, Mb, F)

    # ---- autoregressive prediction loop (one kernel) ----
    pred_all = pred_rollout(hidden, params["pred"], params["gru"], pred_step)
    size_pred = pred_all.shape[1]
    pred = pred_all.reshape(B * pred_step * Mb, F_)                   # channels-last flatten

    sizes_pred = jnp.array([[last_size, pred_step, size_pred]], dtype=jnp.int32)
    # args.cross_gpu_score = True path
    return pred, feature_dist_out, sizes_pred


# ------------------------- main -------------------------

if __name__ == "__main__":
    B, N, C, SL, H, W = 2, 5, 3, 4, 32, 32      # img_dim=32 -> last_size=1; seq_len=4
    FEATURE_DIM = 32
    PRED_STEP = 2

    key = jax.random.PRNGKey(0)
    kp, kx = jax.random.split(key)
    params = init_params(kp, C, FEATURE_DIM)
    block = jax.random.normal(kx, (B, N, C, SL, H, W), dtype=jnp.float32)

    fwd = jax.jit(partial(forward, pred_step=PRED_STEP, feature_dim=FEATURE_DIM))
    pred, feature_dist, sizes_pred = fwd(params, block)
    jax.block_until_ready((pred, feature_dist, sizes_pred))

    last_size = int(math.ceil(H / 32))
    assert pred.shape == (B * PRED_STEP * last_size ** 2, FEATURE_DIM)
    assert feature_dist.shape == (B * PRED_STEP * last_size ** 2, FEATURE_DIM)
    assert sizes_pred.shape == (1, 3)
    assert bool(jnp.all(jnp.isfinite(pred))) and bool(jnp.all(jnp.isfinite(feature_dist)))

    print("KERNEL_OK")
</pallas_src>

<mosaic_0001>
module attributes {stable_mosaic.version = 11 : i64} {
  func.func @_pred_seq_kernel(%arg0: i32, %arg1: i32, %arg2: memref<1x1x32xf32, #tpu.memory_space<vmem>>, %arg3: memref<32x32xbf16, #tpu.memory_space<vmem>>, %arg4: memref<1x32xf32, #tpu.memory_space<vmem>>, %arg5: memref<32x32xbf16, #tpu.memory_space<vmem>>, %arg6: memref<1x32xf32, #tpu.memory_space<vmem>>, %arg7: memref<64x64xbf16, #tpu.memory_space<vmem>>, %arg8: memref<1x64xf32, #tpu.memory_space<vmem>>, %arg9: memref<64x32xbf16, #tpu.memory_space<vmem>>, %arg10: memref<1x32xf32, #tpu.memory_space<vmem>>, %arg11: memref<1x1x1x32xf32, #tpu.memory_space<vmem>>, %arg12: memref<1x32xf32, #tpu.memory_space<vmem>>) attributes {dimension_semantics = [#tpu.dimension_semantics<parallel>, #tpu.dimension_semantics<arbitrary>], iteration_bounds = array<i64: 2, 2>, scalar_prefetch = 0 : i64, scratch_operands = 1 : i64, tpu.core_type = #tpu.core_type<tc>, window_params = [{transform_indices = @transform_0, window_bounds = array<i64: 1, 1, 32>}, {pipeline_mode = #tpu.pipeline_mode<synchronous>, transform_indices = @transform_1, window_bounds = array<i64: 32, 32>}, {pipeline_mode = #tpu.pipeline_mode<synchronous>, transform_indices = @transform_2, window_bounds = array<i64: 1, 32>}, {pipeline_mode = #tpu.pipeline_mode<synchronous>, transform_indices = @transform_3, window_bounds = array<i64: 32, 32>}, {pipeline_mode = #tpu.pipeline_mode<synchronous>, transform_indices = @transform_4, window_bounds = array<i64: 1, 32>}, {pipeline_mode = #tpu.pipeline_mode<synchronous>, transform_indices = @transform_5, window_bounds = array<i64: 64, 64>}, {pipeline_mode = #tpu.pipeline_mode<synchronous>, transform_indices = @transform_6, window_bounds = array<i64: 1, 64>}, {pipeline_mode = #tpu.pipeline_mode<synchronous>, transform_indices = @transform_7, window_bounds = array<i64: 64, 32>}, {pipeline_mode = #tpu.pipeline_mode<synchronous>, transform_indices = @transform_8, window_bounds = array<i64: 1, 32>}, {transform_indices = @transform_9, window_bounds = array<i64: 1, 1, 1, 32>}]} {
    %c0_i32 = arith.constant 0 : i32
    %0 = arith.cmpi eq, %arg1, %c0_i32 : i32
    %1 = arith.extui %0 : i1 to i32
    %c0_i32_0 = arith.constant 0 : i32
    %2 = arith.cmpi ne, %1, %c0_i32_0 : i32
    scf.if %2 {
      %c0_17 = arith.constant 0 : index
      %c0_18 = arith.constant 0 : index
      %c0_19 = arith.constant 0 : index
      %23 = vector.load %arg2[%c0_17, %c0_18, %c0_19] : memref<1x1x32xf32, #tpu.memory_space<vmem>>, vector<1x1x32xf32>
      %24 = vector.shape_cast %23 : vector<1x1x32xf32> to vector<1x32xf32>
      %c0_20 = arith.constant 0 : index
      %c0_21 = arith.constant 0 : index
      %25 = vector.load %arg12[%c0_20, %c0_21] : memref<1x32xf32, #tpu.memory_space<vmem>>, vector<1x32xf32>
      tpu.vector_store %arg12[%c0_20, %c0_21], %24 {strides = array<i32>} : memref<1x32xf32, #tpu.memory_space<vmem>>, vector<1x32xf32>,
    } else {
    }
    %c0 = arith.constant 0 : index
    %c0_1 = arith.constant 0 : index
    %3 = vector.load %arg12[%c0, %c0_1] : memref<1x32xf32, #tpu.memory_space<vmem>>, vector<1x32xf32>
    %4 = arith.truncf %3 : vector<1x32xf32> to vector<1x32xbf16>
    %c0_2 = arith.constant 0 : index
    %c0_3 = arith.constant 0 : index
    %5 = vector.load %arg3[%c0_2, %c0_3] : memref<32x32xbf16, #tpu.memory_space<vmem>>, vector<32x32xbf16>
    %cst = arith.constant dense<0.000000e+00> : vector<1x32xf32>
    %6 = tpu.matmul %4, %5, %cst {dimension_numbers = #tpu.dot_dimension_numbers<[1], [0], [0], [1], [0, 0, 1, 1], [], []>} : vector<1x32xbf16>, vector<32x32xbf16>, vector<1x32xf32> -> vector<1x32xf32>
    %c0_4 = arith.constant 0 : index
    %c0_5 = arith.constant 0 : index
    %7 = vector.load %arg4[%c0_4, %c0_5] : memref<1x32xf32, #tpu.memory_space<vmem>>, vector<1x32xf32>
    %8 = arith.addf %6, %7 : vector<1x32xf32>
    %cst_6 = arith.constant 0.000000e+00 : f32
    %9 = vector.broadcast %cst_6 : f32 to vector<1x32xf32>
    %10 = arith.maximumf %8, %9 : vector<1x32xf32>
    %11 = arith.truncf %10 : vector<1x32xf32> to vector<1x32xbf16>
    %c0_7 = arith.constant 0 : index
    %c0_8 = arith.constant 0 : index
    %12 = vector.load %arg5[%c0_7, %c0_8] : memref<32x32xbf16, #tpu.memory_space<vmem>>, vector<32x32xbf16>
    %cst_9 = arith.constant dense<0.000000e+00> : vector<1x32xf32>
    %13 = tpu.matmul %11, %12, %cst_9 {dimension_numbers = #tpu.dot_dimension_numbers<[1], [0], [0], [1], [0, 0, 1, 1], [], []>} : vector<1x32xbf16>, vector<32x32xbf16>, vector<1x32xf32> -> vector<1x32xf32>
    %c0_10 = arith.constant 0 : index
    %c0_11 = arith.constant 0 : index
    %14 = vector.load %arg6[%c0_10, %c0_11] : memref<1x32xf32, #tpu.memory_space<vmem>>, vector<1x32xf32>
    %15 = arith.addf %13, %14 : vector<1x32xf32>
    %c0_12 = arith.constant 0 : index
    %c0_13 = arith.constant 0 : index
    %c0_14 = arith.constant 0 : index
    %c0_15 = arith.constant 0 : index
    %16 = vector.load %arg11[%c0_12, %c0_13, %c0_14, %c0_15] : memref<1x1x1x32xf32, #tpu.memory_space<vmem>>, vector<1x1x1x32xf32>
    %17 = vector.shape_cast %16 : vector<1x1x1x32xf32> to vector<1x32xf32>
    %18 = vector.shape_cast %15 : vector<1x32xf32> to vector<1x1x1x32xf32>
    tpu.vector_store %arg11[%c0_12, %c0_13, %c0_14, %c0_15], %18 {strides = array<i32>} : memref<1x1x1x32xf32, #tpu.memory_space<vmem>>, vector<1x1x1x32xf32>,
    %c1_i32 = arith.constant 1 : i32
    %19 = arith.addi %arg1, %c1_i32 : i32
    %c2_i32 = arith.constant 2 : i32
    %20 = arith.cmpi slt, %19, %c2_i32 : i32
    %21 = arith.extui %20 : i1 to i32
    %c0_i32_16 = arith.constant 0 : i32
    %22 = arith.cmpi ne, %21, %c0_i32_16 : i32
    scf.if %22 {
      %cst_17 = arith.constant 0.000000e+00 : f32
      %23 = vector.broadcast %cst_17 : f32 to vector<1x32xf32>
      %24 = arith.maximumf %15, %23 : vector<1x32xf32>
      %25 = tpu.concatenate %24, %3 in 1 : vector<1x32xf32>, vector<1x32xf32> -> vector<1x64xf32>
      %26 = arith.truncf %25 : vector<1x64xf32> to vector<1x64xbf16>
      %c0_18 = arith.constant 0 : index
      %c0_19 = arith.constant 0 : index
      %27 = vector.load %arg7[%c0_18, %c0_19] : memref<64x64xbf16, #tpu.memory_space<vmem>>, vector<64x64xbf16>
      %cst_20 = arith.constant dense<0.000000e+00> : vector<1x64xf32>
      %28 = tpu.matmul %26, %27, %cst_20 {dimension_numbers = #tpu.dot_dimension_numbers<[1], [0], [0], [1], [0, 0, 1, 1], [], []>} : vector<1x64xbf16>, vector<64x64xbf16>, vector<1x64xf32> -> vector<1x64xf32>
      %c0_21 = arith.constant 0 : index
      %c0_22 = arith.constant 0 : index
      %29 = vector.load %arg8[%c0_21, %c0_22] : memref<1x64xf32, #tpu.memory_space<vmem>>, vector<1x64xf32>
      %30 = arith.addf %28, %29 : vector<1x64xf32>
      %31 = arith.negf %30 : vector<1x64xf32>
      %32 = math.exp %31 : vector<1x64xf32>
      %cst_23 = arith.constant 1.000000e+00 : f32
      %33 = vector.broadcast %cst_23 : f32 to vector<1x64xf32>
      %34 = arith.addf %33, %32 : vector<1x64xf32>
      %35 = arith.divf %33, %34 : vector<1x64xf32>
      %36 = vector.extract_strided_slice %35 {offsets = [0, 0], sizes = [1, 32], strides = [1, 1]} : vector<1x64xf32> to vector<1x32xf32>
      %37 = vector.extract_strided_slice %35 {offsets = [0, 32], sizes = [1, 32], strides = [1, 1]} : vector<1x64xf32> to vector<1x32xf32>
      %38 = arith.mulf %3, %36 : vector<1x32xf32>
      %39 = tpu.concatenate %24, %38 in 1 : vector<1x32xf32>, vector<1x32xf32> -> vector<1x64xf32>
      %40 = arith.truncf %39 : vector<1x64xf32> to vector<1x64xbf16>
      %c0_24 = arith.constant 0 : index
      %c0_25 = arith.constant 0 : index
      %41 = vector.load %arg9[%c0_24, %c0_25] : memref<64x32xbf16, #tpu.memory_space<vmem>>, vector<64x32xbf16>
      %cst_26 = arith.constant dense<0.000000e+00> : vector<1x32xf32>
      %42 = tpu.matmul %40, %41, %cst_26 {dimension_numbers = #tpu.dot_dimension_numbers<[1], [0], [0], [1], [0, 0, 1, 1], [], []>} : vector<1x64xbf16>, vector<64x32xbf16>, vector<1x32xf32> -> vector<1x32xf32>
      %c0_27 = arith.constant 0 : index
      %c0_28 = arith.constant 0 : index
      %43 = vector.load %arg10[%c0_27, %c0_28] : memref<1x32xf32, #tpu.memory_space<vmem>>, vector<1x32xf32>
      %44 = arith.addf %42, %43 : vector<1x32xf32>
      %45 = math.tanh %44 : vector<1x32xf32>
      %cst_29 = arith.constant 1.000000e+00 : f32
      %46 = vector.broadcast %cst_29 : f32 to vector<1x32xf32>
      %47 = arith.subf %46, %37 : vector<1x32xf32>
      %48 = arith.mulf %3, %47 : vector<1x32xf32>
      %49 = arith.mulf %45, %37 : vector<1x32xf32>
      %50 = arith.addf %48, %49 : vector<1x32xf32>
      %c0_30 = arith.constant 0 : index
      %c0_31 = arith.constant 0 : index
      %51 = vector.load %arg12[%c0_30, %c0_31] : memref<1x32xf32, #tpu.memory_space<vmem>>, vector<1x32xf32>
      tpu.vector_store %arg12[%c0_30, %c0_31], %50 {strides = array<i32>} : memref<1x32xf32, #tpu.memory_space<vmem>>, vector<1x32xf32>,
    } else {
    }
    return
  }
  func.func @transform_0(%arg0: i32, %arg1: i32) -> (i32, i32, i32) {
    %c0_i32 = arith.constant 0 : i32
    %c0_i32_0 = arith.constant 0 : i32
    %c0_i32_1 = arith.constant 0 : i32
    return %arg0, %c0_i32, %c0_i32_0 : i32, i32, i32
  }
  func.func @transform_1(%arg0: i32, %arg1: i32) -> (i32, i32) {
    %c0_i32 = arith.constant 0 : i32
    %c0_i32_0 = arith.constant 0 : i32
    %c0_i32_1 = arith.constant 0 : i32
    return %c0_i32, %c0_i32_0 : i32, i32
  }
  func.func @transform_2(%arg0: i32, %arg1: i32) -> (i32, i32) {
    %c0_i32 = arith.constant 0 : i32
    %c0_i32_0 = arith.constant 0 : i32
    %c0_i32_1 = arith.constant 0 : i32
    return %c0_i32, %c0_i32_0 : i32, i32
  }
  func.func @transform_3(%arg0: i32, %arg1: i32) -> (i32, i32) {
    %c0_i32 = arith.constant 0 : i32
    %c0_i32_0 = arith.constant 0 : i32
    %c0_i32_1 = arith.constant 0 : i32
    return %c0_i32, %c0_i32_0 : i32, i32
  }
  func.func @transform_4(%arg0: i32, %arg1: i32) -> (i32, i32) {
    %c0_i32 = arith.constant 0 : i32
    %c0_i32_0 = arith.constant 0 : i32
    %c0_i32_1 = arith.constant 0 : i32
    return %c0_i32, %c0_i32_0 : i32, i32
  }
  func.func @transform_5(%arg0: i32, %arg1: i32) -> (i32, i32) {
    %c0_i32 = arith.constant 0 : i32
    %c0_i32_0 = arith.constant 0 : i32
    %c0_i32_1 = arith.constant 0 : i32
    return %c0_i32, %c0_i32_0 : i32, i32
  }
  func.func @transform_6(%arg0: i32, %arg1: i32) -> (i32, i32) {
    %c0_i32 = arith.constant 0 : i32
    %c0_i32_0 = arith.constant 0 : i32
    %c0_i32_1 = arith.constant 0 : i32
    return %c0_i32, %c0_i32_0 : i32, i32
  }
  func.func @transform_7(%arg0: i32, %arg1: i32) -> (i32, i32) {
    %c0_i32 = arith.constant 0 : i32
    %c0_i32_0 = arith.constant 0 : i32
    %c0_i32_1 = arith.constant 0 : i32
    return %c0_i32, %c0_i32_0 : i32, i32
  }
  func.func @transform_8(%arg0: i32, %arg1: i32) -> (i32, i32) {
    %c0_i32 = arith.constant 0 : i32
    %c0_i32_0 = arith.constant 0 : i32
    %c0_i32_1 = arith.constant 0 : i32
    return %c0_i32, %c0_i32_0 : i32, i32
  }
  func.func @transform_9(%arg0: i32, %arg1: i32) -> (i32, i32, i32, i32) {
    %c0_i32 = arith.constant 0 : i32
    %c0_i32_0 = arith.constant 0 : i32
    %c0_i32_1 = arith.constant 0 : i32
    return %arg0, %arg1, %c0_i32, %c0_i32_0 : i32, i32, i32, i32
  }
}

module attributes {stable_mosaic.version = 11 : i64} {
  func.func @_gru_seq_kernel(%arg0: i32, %arg1: i32, %arg2: memref<1x1x1x32xf32, #tpu.memory_space<vmem>>, %arg3: memref<64x64xbf16, #tpu.memory_space<vmem>>, %arg4: memref<1x64xf32, #tpu.memory_space<vmem>>, %arg5: memref<64x32xbf16, #tpu.memory_space<vmem>>, %arg6: memref<1x32xf32, #tpu.memory_space<vmem>>, %arg7: memref<1x1x32xf32, #tpu.memory_space<vmem>>, %arg8: memref<1x32xf32, #tpu.memory_space<vmem>>) attributes {dimension_semantics = [#tpu.dimension_semantics<parallel>, #tpu.dimension_semantics<arbitrary>], iteration_bounds = array<i64: 2, 3>, scalar_prefetch = 0 : i64, scratch_operands = 1 : i64, tpu.core_type = #tpu.core_type<tc>, window_params = [{transform_indices = @transform_0, window_bounds = array<i64: 1, 1, 1, 32>}, {pipeline_mode = #tpu.pipeline_mode<synchronous>, transform_indices = @transform_1, window_bounds = array<i64: 64, 64>}, {pipeline_mode = #tpu.pipeline_mode<synchronous>, transform_indices = @transform_2, window_bounds = array<i64: 1, 64>}, {pipeline_mode = #tpu.pipeline_mode<synchronous>, transform_indices = @transform_3, window_bounds = array<i64: 64, 32>}, {pipeline_mode = #tpu.pipeline_mode<synchronous>, transform_indices = @transform_4, window_bounds = array<i64: 1, 32>}, {transform_indices = @transform_5, window_bounds = array<i64: 1, 1, 32>}]} {
    %c0_i32 = arith.constant 0 : i32
    %0 = arith.cmpi eq, %arg1, %c0_i32 : i32
    %1 = arith.extui %0 : i1 to i32
    %c0_i32_0 = arith.constant 0 : i32
    %2 = arith.cmpi ne, %1, %c0_i32_0 : i32
    scf.if %2 {
      %cst_23 = arith.constant 0.000000e+00 : f32
      %38 = vector.broadcast %cst_23 : f32 to vector<1x32xf32>
      %c0_24 = arith.constant 0 : index
      %c0_25 = arith.constant 0 : index
      %39 = vector.load %arg8[%c0_24, %c0_25] : memref<1x32xf32, #tpu.memory_space<vmem>>, vector<1x32xf32>
      tpu.vector_store %arg8[%c0_24, %c0_25], %38 {strides = array<i32>} : memref<1x32xf32, #tpu.memory_space<vmem>>, vector<1x32xf32>,
    } else {
    }
    %c0 = arith.constant 0 : index
    %c0_1 = arith.constant 0 : index
    %c0_2 = arith.constant 0 : index
    %c0_3 = arith.constant 0 : index
    %3 = vector.load %arg2[%c0, %c0_1, %c0_2, %c0_3] : memref<1x1x1x32xf32, #tpu.memory_space<vmem>>, vector<1x1x1x32xf32>
    %4 = vector.shape_cast %3 : vector<1x1x1x32xf32> to vector<1x32xf32>
    %cst = arith.constant 0.000000e+00 : f32
    %5 = vector.broadcast %cst : f32 to vector<1x32xf32>
    %6 = arith.maximumf %4, %5 : vector<1x32xf32>
    %c0_4 = arith.constant 0 : index
    %c0_5 = arith.constant 0 : index
    %7 = vector.load %arg8[%c0_4, %c0_5] : memref<1x32xf32, #tpu.memory_space<vmem>>, vector<1x32xf32>
    %8 = tpu.concatenate %6, %7 in 1 : vector<1x32xf32>, vector<1x32xf32> -> vector<1x64xf32>
    %9 = arith.truncf %8 : vector<1x64xf32> to vector<1x64xbf16>
    %c0_6 = arith.constant 0 : index
    %c0_7 = arith.constant 0 : index
    %10 = vector.load %arg3[%c0_6, %c0_7] : memref<64x64xbf16, #tpu.memory_space<vmem>>, vector<64x64xbf16>
    %cst_8 = arith.constant dense<0.000000e+00> : vector<1x64xf32>
    %11 = tpu.matmul %9, %10, %cst_8 {dimension_numbers = #tpu.dot_dimension_numbers<[1], [0], [0], [1], [0, 0, 1, 1], [], []>} : vector<1x64xbf16>, vector<64x64xbf16>, vector<1x64xf32> -> vector<1x64xf32>
    %c0_9 = arith.constant 0 : index
    %c0_10 = arith.constant 0 : index
    %12 = vector.load %arg4[%c0_9, %c0_10] : memref<1x64xf32, #tpu.memory_space<vmem>>, vector<1x64xf32>
    %13 = arith.addf %11, %12 : vector<1x64xf32>
    %14 = arith.negf %13 : vector<1x64xf32>
    %15 = math.exp %14 : vector<1x64xf32>
    %cst_11 = arith.constant 1.000000e+00 : f32
    %16 = vector.broadcast %cst_11 : f32 to vector<1x64xf32>
    %17 = arith.addf %16, %15 : vector<1x64xf32>
    %18 = arith.divf %16, %17 : vector<1x64xf32>
    %19 = vector.extract_strided_slice %18 {offsets = [0, 0], sizes = [1, 32], strides = [1, 1]} : vector<1x64xf32> to vector<1x32xf32>
    %20 = vector.extract_strided_slice %18 {offsets = [0, 32], sizes = [1, 32], strides = [1, 1]} : vector<1x64xf32> to vector<1x32xf32>
    %21 = arith.mulf %7, %19 : vector<1x32xf32>
    %22 = tpu.concatenate %6, %21 in 1 : vector<1x32xf32>, vector<1x32xf32> -> vector<1x64xf32>
    %23 = arith.truncf %22 : vector<1x64xf32> to vector<1x64xbf16>
    %c0_12 = arith.constant 0 : index
    %c0_13 = arith.constant 0 : index
    %24 = vector.load %arg5[%c0_12, %c0_13] : memref<64x32xbf16, #tpu.memory_space<vmem>>, vector<64x32xbf16>
    %cst_14 = arith.constant dense<0.000000e+00> : vector<1x32xf32>
    %25 = tpu.matmul %23, %24, %cst_14 {dimension_numbers = #tpu.dot_dimension_numbers<[1], [0], [0], [1], [0, 0, 1, 1], [], []>} : vector<1x64xbf16>, vector<64x32xbf16>, vector<1x32xf32> -> vector<1x32xf32>
    %c0_15 = arith.constant 0 : index
    %c0_16 = arith.constant 0 : index
    %26 = vector.load %arg6[%c0_15, %c0_16] : memref<1x32xf32, #tpu.memory_space<vmem>>, vector<1x32xf32>
    %27 = arith.addf %25, %26 : vector<1x32xf32>
    %28 = math.tanh %27 : vector<1x32xf32>
    %cst_17 = arith.constant 1.000000e+00 : f32
    %29 = vector.broadcast %cst_17 : f32 to vector<1x32xf32>
    %30 = arith.subf %29, %20 : vector<1x32xf32>
    %31 = arith.mulf %7, %30 : vector<1x32xf32>
    %32 = arith.mulf %28, %20 : vector<1x32xf32>
    %33 = arith.addf %31, %32 : vector<1x32xf32>
    %c0_18 = arith.constant 0 : index
    %c0_19 = arith.constant 0 : index
    %34 = vector.load %arg8[%c0_18, %c0_19] : memref<1x32xf32, #tpu.memory_space<vmem>>, vector<1x32xf32>
    tpu.vector_store %arg8[%c0_18, %c0_19], %33 {strides = array<i32>} : memref<1x32xf32, #tpu.memory_space<vmem>>, vector<1x32xf32>,
    %c0_20 = arith.constant 0 : index
    %c0_21 = arith.constant 0 : index
    %c0_22 = arith.constant 0 : index
    %35 = vector.load %arg7[%c0_20, %c0_21, %c0_22] : memref<1x1x32xf32, #tpu.memory_space<vmem>>, vector<1x1x32xf32>
    %36 = vector.shape_cast %35 : vector<1x1x32xf32> to vector<1x32xf32>
    %37 = vector.shape_cast %33 : vector<1x32xf32> to vector<1x1x32xf32>
    tpu.vector_store %arg7[%c0_20, %c0_21, %c0_22], %37 {strides = array<i32>} : memref<1x1x32xf32, #tpu.memory_space<vmem>>, vector<1x1x32xf32>,
    return
  }
  func.func @transform_0(%arg0: i32, %arg1: i32) -> (i32, i32, i32, i32) {
    %c0_i32 = arith.constant 0 : i32
    %c0_i32_0 = arith.constant 0 : i32
    %c0_i32_1 = arith.constant 0 : i32
    return %arg0, %arg1, %c0_i32, %c0_i32_0 : i32, i32, i32, i32
  }
  func.func @transform_1(%arg0: i32, %arg1: i32) -> (i32, i32) {
    %c0_i32 = arith.constant 0 : i32
    %c0_i32_0 = arith.constant 0 : i32
    %c0_i32_1 = arith.constant 0 : i32
    return %c0_i32, %c0_i32_0 : i32, i32
  }
  func.func @transform_2(%arg0: i32, %arg1: i32) -> (i32, i32) {
    %c0_i32 = arith.constant 0 : i32
    %c0_i32_0 = arith.constant 0 : i32
    %c0_i32_1 = arith.constant 0 : i32
    return %c0_i32, %c0_i32_0 : i32, i32
  }
  func.func @transform_3(%arg0: i32, %arg1: i32) -> (i32, i32) {
    %c0_i32 = arith.constant 0 : i32
    %c0_i32_0 = arith.constant 0 : i32
    %c0_i32_1 = arith.constant 0 : i32
    return %c0_i32, %c0_i32_0 : i32, i32
  }
  func.func @transform_4(%arg0: i32, %arg1: i32) -> (i32, i32) {
    %c0_i32 = arith.constant 0 : i32
    %c0_i32_0 = arith.constant 0 : i32
    %c0_i32_1 = arith.constant 0 : i32
    return %c0_i32, %c0_i32_0 : i32, i32
  }
  func.func @transform_5(%arg0: i32, %arg1: i32) -> (i32, i32, i32) {
    %c0_i32 = arith.constant 0 : i32
    %c0_i32_0 = arith.constant 0 : i32
    %c0_i32_1 = arith.constant 0 : i32
    return %arg0, %c0_i32, %c0_i32_0 : i32, i32, i32
  }
}

</mosaic_0001>

<llo_original>
// kernel: forward.2
$region0: #{forward.2}
  #allocation0 [shape = 'u32[]', space=smem, size = 0x4, offset = 0x4, fixed_abs, tag = 'smem constant byte address 0x4 - core index']
  #allocation1 [shape = 'u32[144,128]{1,0:T(1,128)}', space=vmem, size = 0x12000, scoped, tag = 'internal scratch']
  #allocation2 [shape = 'f32[1,32]{1,0:T(1,128)}', space=vmem, size = 0x200, scoped, tag = 'scratch operand']
  %s0 = inlined_call_operand.vmem [shape: f32[2,3,1,32], index: 0, kind: input, shape index: {}]
  %s1 = inlined_call_operand.vmem [shape: bf16[64,64], index: 1, kind: input, shape index: {}]
  %s2 = inlined_call_operand.vmem [shape: f32[1,64], index: 2, kind: input, shape index: {}]
  %s3 = inlined_call_operand.vmem [shape: bf16[64,32], index: 3, kind: input, shape index: {}]
  %s4 = inlined_call_operand.vmem [shape: f32[1,32], index: 4, kind: input, shape index: {}]
  %s5 = inlined_call_operand.vmem [shape: f32[2,1,32], index: 5, kind: output, shape index: {}]
  %s6 = sld [smem:[#allocation0]]
  $region57: #{forward.2} parent=0
    _
  %s8 = ssub.s32 1, %s6
  %s9 = scalar_select 0, %s8, %s6
  loop: start=0, step=1, limit=8
  $region2: #{forward.2} parent=0 // loop_pre_header
    _
  $region3: #{forward.2} parent=0 // loop_header
    %s11 = sphi 0, %s15
    %p12 = scmp.ge.s32.totalorder %s11, 8
    %s18 = sphi 0, %s30
    %s19 = sphi 0, %s26
    %s20 = sphi 0, %s18
    %s21 = sphi 0, %s19
    %s22 = sphi 0, %s20
    %s23 = sphi 0, %s21
    %s35 = sphi 0, %s37
    %s38 = sphi 0, %s35
    %s39 = sphi 0, %s38
    %s55 = sphi 0, %s39
    %s59 = sphi 0, %s59
    %s61 = sphi 0, %s59
    %s62 = sphi 0, %s61
    %s76 = sphi 0, %s62
    %s80 = sphi 0, %s80
    %s82 = sphi 0, %s80
    %s83 = sphi 0, %s82
    %s97 = sphi 0, %s83
    %s101 = sphi 0, %s101
    %s103 = sphi 0, %s101
    %s104 = sphi 0, %s103
    %s118 = sphi 0, %s104
    %s122 = sphi 0, %s122
    %s124 = sphi 0, %s122
    %s125 = sphi 0, %s124
    %s139 = sphi 0, %s125
    %s145 = sphi 0, %s147
    %s148 = sphi 0, %s145
    %s149 = sphi 0, %s148
    %s165 = sphi 0, %s149
  $region4: #{forward.2} parent=0 // loop_header_branch
    %14 = sbr.rel (%p12) target = $region8
  $region5: #{forward.2} parent=0 // loop_body
    %s16 = ssub.s32 %s11, 1
    %s17 = ssub.s32 %s11, 2
    %s24 = sadd.s32 1, %s19
    %p25 = scmp.ge.s32.totalorder %s24, 3
    %s26 = scalar_select %p25, 0, %s24
    %s27 = sadd.s32 1, %s18
    %s28 = scalar_select %p25, %s27, %s18
    %p29 = scmp.ge.s32.totalorder %s28, 2
    %s30 = scalar_select %p29, 0, %s28
    %s31 = ssub.s32 %s18, %s30
    %s32 = ssub.s32 %s19, %s26
    %s33 = sor.u32 %s31, %s32
    %p34 = scmp.eq.s32.totalorder %s33, 0
    %s36 = sadd.s32 %s35, 1
    %s37 = scalar_select %p34, %s35, %s36
    %p40 = pneg %p34
    %p41 = scmp.eq.s32.totalorder %s11, 5
    %p42 = por %p40, %p41
    %p43 = scmp.ne.s32.totalorder %s35, %s38
    %p44 = scmp.eq.s32.totalorder %s11, 0
    %p45 = por %p43, %p44
    %p46 = scmp.ne.s32.totalorder %s35, %s38
    %p47 = scmp.eq.s32.totalorder %s16, 5
    %p48 = por %p46, %p47
    %p49 = scmp.ne.s32.totalorder %s38, %s39
    %p50 = scmp.eq.s32.totalorder %s16, 0
    %p51 = por %p49, %p50
    %p52 = scmp.ne.s32.totalorder %s38, %s39
    %p53 = scmp.eq.s32.totalorder %s17, 5
    %p54 = por %p52, %p53
    %p56 = scmp.ne.s32.totalorder %s39, %s55
    %p57 = scmp.eq.s32.totalorder %s17, 0
    %p58 = por %p56, %p57
    %s60 = sadd.s32 %s59, 1
    %p63 = scmp.eq.s32.totalorder %s11, 5
    %p64 = scmp.ne.s32.totalorder %s59, %s61
    %p65 = scmp.eq.s32.totalorder %s11, 0
    %p66 = por %p64, %p65
    %p67 = scmp.ne.s32.totalorder %s59, %s61
    %p68 = scmp.eq.s32.totalorder %s16, 5
    %p69 = por %p67, %p68
    %p70 = scmp.ne.s32.totalorder %s61, %s62
    %p71 = scmp.eq.s32.totalorder %s16, 0
    %p72 = por %p70, %p71
    %p73 = scmp.ne.s32.totalorder %s61, %s62
    %p74 = scmp.eq.s32.totalorder %s17, 5
    %p75 = por %p73, %p74
    %p77 = scmp.ne.s32.totalorder %s62, %s76
    %p78 = scmp.eq.s32.totalorder %s17, 0
    %p79 = por %p77, %p78
    %s81 = sadd.s32 %s80, 1
    %p84 = scmp.eq.s32.totalorder %s11, 5
    %p85 = scmp.ne.s32.totalorder %s80, %s82
    %p86 = scmp.eq.s32.totalorder %s11, 0
    %p87 = por %p85, %p86
    %p88 = scmp.ne.s32.totalorder %s80, %s82
    %p89 = scmp.eq.s32.totalorder %s16, 5
    %p90 = por %p88, %p89
    %p91 = scmp.ne.s32.totalorder %s82, %s83
    %p92 = scmp.eq.s32.totalorder %s16, 0
    %p93 = por %p91, %p92
    %p94 = scmp.ne.s32.totalorder %s82, %s83
    %p95 = scmp.eq.s32.totalorder %s17, 5
    %p96 = por %p94, %p95
    %p98 = scmp.ne.s32.totalorder %s83, %s97
    %p99 = scmp.eq.s32.totalorder %s17, 0
    %p100 = por %p98, %p99
    %s102 = sadd.s32 %s101, 1
    %p105 = scmp.eq.s32.totalorder %s11, 5
    %p106 = scmp.ne.s32.totalorder %s101, %s103
    %p107 = scmp.eq.s32.totalorder %s11, 0
    %p108 = por %p106, %p107
    %p109 = scmp.ne.s32.totalorder %s101, %s103
    %p110 = scmp.eq.s32.totalorder %s16, 5
    %p111 = por %p109, %p110
    %p112 = scmp.ne.s32.totalorder %s103, %s104
    %p113 = scmp.eq.s32.totalorder %s16, 0
    %p114 = por %p112, %p113
    %p115 = scmp.ne.s32.totalorder %s103, %s104
    %p116 = scmp.eq.s32.totalorder %s17, 5
    %p117 = por %p115, %p116
    %p119 = scmp.ne.s32.totalorder %s104, %s118
    %p120 = scmp.eq.s32.totalorder %s17, 0
    %p121 = por %p119, %p120
    %s123 = sadd.s32 %s122, 1
    %p126 = scmp.eq.s32.totalorder %s11, 5
    %p127 = scmp.ne.s32.totalorder %s122, %s124
    %p128 = scmp.eq.s32.totalorder %s11, 0
    %p129 = por %p127, %p128
    %p130 = scmp.ne.s32.totalorder %s122, %s124
    %p131 = scmp.eq.s32.totalorder %s16, 5
    %p132 = por %p130, %p131
    %p133 = scmp.ne.s32.totalorder %s124, %s125
    %p134 = scmp.eq.s32.totalorder %s16, 0
    %p135 = por %p133, %p134
    %p136 = scmp.ne.s32.totalorder %s124, %s125
    %p137 = scmp.eq.s32.totalorder %s17, 5
    %p138 = por %p136, %p137
    %p140 = scmp.ne.s32.totalorder %s125, %s139
    %p141 = scmp.eq.s32.totalorder %s17, 0
    %p142 = por %p140, %p141
    %s143 = ssub.s32 %s18, %s30
    %p144 = scmp.eq.s32.totalorder %s143, 0
    %s146 = sadd.s32 %s145, 1
    %s147 = scalar_select %p144, %s145, %s146
    %p150 = pneg %p144
    %p151 = scmp.eq.s32.totalorder %s11, 5
    %p152 = por %p150, %p151
    %p153 = scmp.ne.s32.totalorder %s145, %s148
    %p154 = scmp.eq.s32.totalorder %s11, 0
    %p155 = por %p153, %p154
    %p156 = scmp.ne.s32.totalorder %s145, %s148
    %p157 = scmp.eq.s32.totalorder %s16, 5
    %p158 = por %p156, %p157
    %p159 = scmp.ne.s32.totalorder %s148, %s149
    %p160 = scmp.eq.s32.totalorder %s16, 0
    %p161 = por %p159, %p160
    %p162 = scmp.ne.s32.totalorder %s148, %s149
    %p163 = scmp.eq.s32.totalorder %s17, 5
    %p164 = por %p162, %p163
    %p166 = scmp.ne.s32.totalorder %s149, %s165
    %p167 = scmp.eq.s32.totalorder %s17, 0
    %p168 = por %p166, %p167
    %p169 = scmp.le.s32.totalorder 1, %s11
    %p170 = scmp.lt.s32.totalorder %s11, 7
    %p171 = pnand %p169, %p170
    %p172 = pneg %p171
    // Predicated region
    $region9: #{forward.2} parent=5 // pred_check
      _
    $region10: #{forward.2} parent=5 // pred_check_branch
      %174 = sbr.rel (%p171) target = $region12
    $region11: #{forward.2} parent=5 // pred_region
      %s175 = ssub.s32 %s11, 1
      // Predicated region
      $region13: #{forward.2} parent=11 // pred_check
        %p176 = pneg %p72
      $region14: #{forward.2} parent=11 // pred_check_branch
        %178 = sbr.rel (%p176) target = $region16
      $region15: #{forward.2} parent=11 // pred_region
        _
      $region16: #{forward.2} parent=11 // pred_fallthru
        _
      // Predicated region
      $region17: #{forward.2} parent=11 // pred_check
        %p179 = pneg %p93
      $region18: #{forward.2} parent=11 // pred_check_branch
        %181 = sbr.rel (%p179) target = $region20
      $region19: #{forward.2} parent=11 // pred_region
        _
      $region20: #{forward.2} parent=11 // pred_fallthru
        _
      // Predicated region
      $region21: #{forward.2} parent=11 // pred_check
        %p182 = pneg %p114
      $region22: #{forward.2} parent=11 // pred_check_branch
        %184 = sbr.rel (%p182) target = $region24
      $region23: #{forward.2} parent=11 // pred_region
        _
      $region24: #{forward.2} parent=11 // pred_fallthru
        _
      // Predicated region
      $region25: #{forward.2} parent=11 // pred_check
        %p185 = pneg %p135
      $region26: #{forward.2} parent=11 // pred_check_branch
        %187 = sbr.rel (%p185) target = $region28
      $region27: #{forward.2} parent=11 // pred_region
        _
      $region28: #{forward.2} parent=11 // pred_fallthru
        _
    $region12: #{forward.2} parent=5 // pred_fallthru
      _
    %p188 = scmp.lt.s32.totalorder %s11, 6
    // Predicated region
    $region29: #{forward.2} parent=5 // pred_check
      %p189 = pneg %p188
    $region30: #{forward.2} parent=5 // pred_check_branch
      %191 = sbr.rel (%p189) target = $region32
    $region31: #{forward.2} parent=5 // pred_region
      // Predicated region
      $region33: #{forward.2} parent=31 // pred_check
        %p192 = pneg %p45
      $region34: #{forward.2} parent=31 // pred_check_branch
        %194 = sbr.rel (%p192) target = $region36
      $region35: #{forward.2} parent=31 // pred_region
        %p195 = scmp.lt.s32.totalorder %s18, 1
        %s196 = scalar_select %p195, %s18, 1
        %p197 = scmp.lt.s32.totalorder %s19, 2
        %s198 = scalar_select %p197, %s19, 2
        %s199 = smul.addr %s196, 3
        %s200 = sadd.s32 %s198, %s199
        %s201 = scalar_lea.vmem %s0, %s200
      $region36: #{forward.2} parent=31 // pred_fallthru
        _
    $region32: #{forward.2} parent=5 // pred_fallthru
      _
    %p202 = scmp.le.s32.totalorder 1, %s11
    %p203 = scmp.lt.s32.totalorder %s11, 7
    %p204 = pnand %p202, %p203
    %p205 = pneg %p204
    // Predicated region
    $region37: #{forward.2} parent=5 // pred_check
      _
    $region38: #{forward.2} parent=5 // pred_check_branch
      %207 = sbr.rel (%p204) target = $region40
    $region39: #{forward.2} parent=5 // pred_region
      %s208 = ssub.s32 %s11, 1
      %p209 = scmp.lt.s32.totalorder %s20, 1
      %s210 = scalar_select %p209, %s20, 1
      %p211 = scmp.lt.s32.totalorder %s21, 2
      %s212 = scalar_select %p211, %s21, 2
      %s213 = smul.addr %s210, 3
      %s214 = sadd.s32 %s212, %s213
      %s215 = scalar_lea.vmem %s0, %s214
      %p216 = pneg %p51
      %p217 = pneg %p48
      %p218 = pneg %p72
      %p219 = pneg %p69
      %p220 = pneg %p93
      %p221 = pneg %p90
      %p222 = pneg %p114
      %p223 = pneg %p111
      %p224 = pneg %p135
      %p225 = pneg %p132
      %p226 = pneg %p161
      %p227 = pneg %p158
      %p228 = scmp.lt.s32.totalorder %s20, 1
      %s229 = scalar_select %p228, %s20, 1
      %s230 = scalar_lea.vmem %s5, %s229
      %p231 = scmp.lt.s32.totalorder %s20, 1
      %s232 = scalar_select %p231, %s20, 1
      %p233 = scmp.lt.s32.totalorder %s21, 2
      %s234 = scalar_select %p233, %s21, 2
      %s235 = smul.addr %s232, 3
      %s236 = sadd.s32 %s234, %s235
      %s237 = scalar_lea.vmem %s0, %s236
      %p238 = scmp.lt.s32.totalorder %s20, 1
      %s239 = scalar_select %p238, %s20, 1
      %s240 = scalar_lea.vmem %s5, %s239
      %p242 = scmp.eq.s32.totalorder %s21, 0
      // Predicated region
      $region41: #{forward.2} parent=39 // pred_check
        %p243 = pneg %p242
      $region42: #{forward.2} parent=39 // pred_check_branch
        %245 = sbr.rel (%p243) target = $region44
      $region43: #{forward.2} parent=39 // pred_region
        %vm246 = vcmask 253952
        %247 = vst.msk [vmem:[#allocation2] sm:$0x1] %vm246, 0.0
      $region44: #{forward.2} parent=39 // pred_fallthru
        _
      %v248 = vld [vmem:[%s237] sm:$0x1]
      %v249 = vmax.f32 %v248, 0.0
      %v250 = vld [vmem:[#allocation2] sm:$0x1]
      %v252 = vlaneseq
      %v253 = vshrl.u32 %v252, 7
      %v254 = vsub.s32 0, %v253
      %v255 = vrot.slane %v250, %v254
      %256 = vrot.lane.b32.xlu0 %v255, 32
      %v257 = vpop.permute.xlu0 %256
      %vm259 = vcmask 261120
      %v260 = vsel %vm259, %v249, %v257
      %v261 = vpack.c.bf16 %v260, %v260
      %v262 = vld [vmem:[%s1] sm:$0xf]
      %v263 = vld [vmem:[%s1 + $0x4] sm:$0xf]
      %v264 = vld [vmem:[%s1 + $0x8] sm:$0xf]
      %v265 = vld [vmem:[%s1 + $0xc] sm:$0xf]
      %v266 = vld [vmem:[%s1 + $0x10] sm:$0xf]
      %v267 = vld [vmem:[%s1 + $0x14] sm:$0xf]
      %v268 = vld [vmem:[%s1 + $0x18] sm:$0xf]
      %v269 = vld [vmem:[%s1 + $0x1c] sm:$0xf]
      %v270 = vld [vmem:[%s2] sm:$0x1]
      %v279 = vunpack.c.l.b16 %v262
      %v280 = vunpack.c.l.b16 %v263
      %v281 = vunpack.c.l.b16 %v264
      %v282 = vunpack.c.l.b16 %v265
      %v283 = vunpack.c.l.b16 %v266
      %v284 = vunpack.c.l.b16 %v267
      %v285 = vunpack.c.l.b16 %v268
      %v286 = vunpack.c.l.b16 %v269
      %v287 = vpack.c.b16 %v280, %v279
      %v288 = vpack.c.b16 %v282, %v281
      %v289 = vpack.c.b16 %v284, %v283
      %v290 = vpack.c.b16 %v286, %v285
      %vm295 = vcmask 523264
      %v297 = vsel %vm295, %v261, 0
      %299 = vmatprep.subr.bf16.mxu0 0
      %300 = vmatpush1.bf16.msra.mxu0 %v287
      %301 = vmatprep.subr.bf16.mxu0 0
      %302 = vmatpush1.bf16.msra.mxu0 %v288
      %303 = vmatprep.subr.bf16.mxu0 0
      %304 = vmatpush1.bf16.msra.mxu0 %v289
      %305 = vmatprep.subr.bf16.mxu0 0
      %306 = vmatpush1.bf16.msra.mxu0 %v290
      %307 = vmatprep.subr.bf16.mxu0 0
      %308 = vmatpush1.bf16.msra.mxu0 0
      %309 = vmatprep.subr.bf16.mxu0 0
      %310 = vmatpush1.bf16.msra.mxu0 0
      %311 = vmatprep.subr.bf16.mxu0 0
      %312 = vmatpush1.bf16.msra.mxu0 0
      %313 = vmatprep.subr.bf16.mxu0 0
      %314 = vmatpush1.bf16.msra.mxu0 0
      %315 = vmatprep.subr.bf16.mxu0 0
      %316 = vmatpush1.bf16.msra.mxu0 0
      %317 = vmatprep.subr.bf16.mxu0 0
      %318 = vmatpush1.bf16.msra.mxu0 0
      %319 = vmatprep.subr.bf16.mxu0 0
      %320 = vmatpush1.bf16.msra.mxu0 0
      %321 = vmatprep.subr.bf16.mxu0 0
      %322 = vmatpush1.bf16.msra.mxu0 0
      %323 = vmatprep.subr.bf16.mxu0 0
      %324 = vmatpush1.bf16.msra.mxu0 0
      %325 = vmatprep.subr.bf16.mxu0 0
      %326 = vmatpush1.bf16.msra.mxu0 0
      %327 = vmatprep.subr.bf16.mxu0 0
      %328 = vmatpush1.bf16.msra.mxu0 0
      %329 = vmatprep.subr.bf16.mxu0 0
      %330 = vmatpush1.bf16.msra.mxu0 0
      %331 = vmatprep.mubr.bf16.mxu0 0
      %332 = vmatmul.mubr.bf16.gmra.mrb[0].mxu0 %v297
      %v333 = vpop.f32.mrb[0].mxu0
      %v334 = vadd.f32 %v270, %v333
      %v335 = vpop.f32.mrb[0].mxu0
      %v336 = vpop.f32.mrb[0].mxu0
      %v337 = vpop.f32.mrb[0].mxu0
      %338 = vdwg.mxu0
      %v339 = vxor.u32 %v334, 2147483648
      %v340 = vmul.f32 %v339, 1.442695
      %v341 = vpow.pop %v340
      %v342 = vadd.f32 %v341, 1.0
      %v343 = vrcp.pop %v342
      %v344 = vmul.f32 1.0, %v343
      %v345 = vmul.f32 %v250, %v344
      %v347 = vlaneseq
      %v348 = vshrl.u32 %v347, 7
      %v349 = vsub.s32 0, %v348
      %v350 = vrot.slane %v345, %v349
      %351 = vrot.lane.b32.xlu0 %v350, 32
      %v352 = vpop.permute.xlu0 %351
      %v354 = vsel %vm259, %v249, %v352
      %v355 = vpack.c.bf16 %v354, %v354
      %v356 = vld [vmem:[%s3] sm:$0xf]
      %v357 = vld [vmem:[%s3 + $0x4] sm:$0xf]
      %v358 = vld [vmem:[%s3 + $0x8] sm:$0xf]
      %v359 = vld [vmem:[%s3 + $0xc] sm:$0xf]
      %v360 = vld [vmem:[%s3 + $0x10] sm:$0xf]
      %v361 = vld [vmem:[%s3 + $0x14] sm:$0xf]
      %v362 = vld [vmem:[%s3 + $0x18] sm:$0xf]
      %v363 = vld [vmem:[%s3 + $0x1c] sm:$0xf]
      %v364 = vld [vmem:[%s4] sm:$0x1]
      %v373 = vunpack.c.l.b16 %v356
      %v374 = vunpack.c.l.b16 %v357
      %v375 = vunpack.c.l.b16 %v358
      %v376 = vunpack.c.l.b16 %v359
      %v377 = vunpack.c.l.b16 %v360
      %v378 = vunpack.c.l.b16 %v361
      %v379 = vunpack.c.l.b16 %v362
      %v380 = vunpack.c.l.b16 %v363
      %v381 = vpack.c.b16 %v374, %v373
      %v382 = vpack.c.b16 %v376, %v375
      %v383 = vpack.c.b16 %v378, %v377
      %v384 = vpack.c.b16 %v380, %v379
      %v390 = vsel %vm295, %v355, 0
      %392 = vmatprep.subr.bf16.mxu0 0
      %393 = vmatpush1.bf16.msra.mxu0 %v381
      %394 = vmatprep.subr.bf16.mxu0 0
      %395 = vmatpush1.bf16.msra.mxu0 %v382
      %396 = vmatprep.subr.bf16.mxu0 0
      %397 = vmatpush1.bf16.msra.mxu0 %v383
      %398 = vmatprep.subr.bf16.mxu0 0
      %399 = vmatpush1.bf16.msra.mxu0 %v384
      %400 = vmatprep.subr.bf16.mxu0 0
      %401 = vmatpush1.bf16.msra.mxu0 0
      %402 = vmatprep.subr.bf16.mxu0 0
      %403 = vmatpush1.bf16.msra.mxu0 0
      %404 = vmatprep.subr.bf16.mxu0 0
      %405 = vmatpush1.bf16.msra.mxu0 0
      %406 = vmatprep.subr.bf16.mxu0 0
      %407 = vmatpush1.bf16.msra.mxu0 0
      %408 = vmatprep.subr.bf16.mxu0 0
      %409 = vmatpush1.bf16.msra.mxu0 0
      %410 = vmatprep.subr.bf16.mxu0 0
      %411 = vmatpush1.bf16.msra.mxu0 0
      %412 = vmatprep.subr.bf16.mxu0 0
      %413 = vmatpush1.bf16.msra.mxu0 0
      %414 = vmatprep.subr.bf16.mxu0 0
      %415 = vmatpush1.bf16.msra.mxu0 0
      %416 = vmatprep.subr.bf16.mxu0 0
      %417 = vmatpush1.bf16.msra.mxu0 0
      %418 = vmatprep.subr.bf16.mxu0 0
      %419 = vmatpush1.bf16.msra.mxu0 0
      %420 = vmatprep.subr.bf16.mxu0 0
      %421 = vmatpush1.bf16.msra.mxu0 0
      %422 = vmatprep.subr.bf16.mxu0 0
      %423 = vmatpush1.bf16.msra.mxu0 0
      %424 = vmatprep.mubr.bf16.mxu0 0
      %425 = vmatmul.mubr.bf16.gmra.mrb[0].mxu0 %v390
      %v426 = vpop.f32.mrb[0].mxu0
      %v427 = vadd.f32 %v364, %v426
      %v428 = vpop.f32.mrb[0].mxu0
      %v429 = vpop.f32.mrb[0].mxu0
      %v430 = vpop.f32.mrb[0].mxu0
      %431 = vdwg.mxu0
      %v432 = vtanh.pop %v427
      %v433 = vsub.f32 1.0, %v344
      %v436 = vunpack.c.l.s4 1966171168
      %v437 = vunpack.c.0.s8 %v436
      %v438 = vlaneseq
      %v439 = vshrl.u32 %v438, 7
      %v440 = vsub.s32 %v437, %v439
      %v441 = vrot.slane %v433, %v440
      %v443 = vunpack.c.l.s4 1966171168
      %v444 = vunpack.c.0.s8 %v443
      %v445 = vlaneseq
      %v446 = vshrl.u32 %v445, 7
      %v447 = vsub.s32 %v444, %v446
      %v448 = vrot.slane %v441, %v447
      %449 = vrot.lane.b32.xlu0 %v448, 96
      %v450 = vpop.permute.xlu0 %449
      %v452 = vmul.f32 %v250, %v450
      %454 = vrot.lane.b32.xlu0 %v344, 96
      %v455 = vpop.permute.xlu0 %454
      %v457 = vmul.f32 %v432, %v455
      %v458 = vadd.f32 %v452, %v457
      %vm459 = vcmask 253952
      %460 = vst.msk [vmem:[#allocation2] sm:$0x1] %vm459, %v458
      %461 = vst.msk [vmem:[%s240] sm:$0x1] %vm459, %v458
      %p462 = scmp.lt.s32.totalorder %s20, 1
      %s463 = scalar_select %p462, %s20, 1
      %s464 = scalar_lea.vmem %s5, %s463
      // Predicated region
      $region45: #{forward.2} parent=39 // pred_check
        %p465 = pneg %p158
      $region46: #{forward.2} parent=39 // pred_check_branch
        %467 = sbr.rel (%p465) target = $region48
      $region47: #{forward.2} parent=39 // pred_region
        _
      $region48: #{forward.2} parent=39 // pred_fallthru
        _
    $region40: #{forward.2} parent=5 // pred_fallthru
      _
    %p468 = scmp.le.s32.totalorder 2, %s11
    // Predicated region
    $region49: #{forward.2} parent=5 // pred_check
      %p469 = pneg %p468
    $region50: #{forward.2} parent=5 // pred_check_branch
      %471 = sbr.rel (%p469) target = $region52
    $region51: #{forward.2} parent=5 // pred_region
      %s472 = ssub.s32 %s11, 2
      // Predicated region
      $region53: #{forward.2} parent=51 // pred_check
        %p473 = pneg %p164
      $region54: #{forward.2} parent=51 // pred_check_branch
        %475 = sbr.rel (%p473) target = $region56
      $region55: #{forward.2} parent=51 // pred_region
        %p476 = scmp.lt.s32.totalorder %s22, 1
        %s477 = scalar_select %p476, %s22, 1
        %s478 = scalar_lea.vmem %s5, %s477
      $region56: #{forward.2} parent=51 // pred_fallthru
        _
    $region52: #{forward.2} parent=5 // pred_fallthru
      _
  $region6: #{forward.2} parent=0 // loop_footer
    %s15 = sadd.s32 1, %s11
  $region7: #{forward.2} parent=0 // loop_footer_branch
    %10 = sbr.rel target = $region3
  $region8: #{forward.2} parent=0 // loop_exit
    _

// kernel: forward.3
$region0: #{forward.3}
  #allocation0 [shape = 'u32[]', space=smem, size = 0x4, offset = 0x4, fixed_abs, tag = 'smem constant byte address 0x4 - core index']
  #allocation1 [shape = 'u32[144,128]{1,0:T(1,128)}', space=vmem, size = 0x12000, scoped, tag = 'internal scratch']
  #allocation2 [shape = 'f32[1,32]{1,0:T(1,128)}', space=vmem, size = 0x200, scoped, tag = 'scratch operand']
  %s0 = inlined_call_operand.vmem [shape: f32[2,1,32], index: 0, kind: input, shape index: {}]
  %s1 = inlined_call_operand.vmem [shape: bf16[32,32], index: 1, kind: input, shape index: {}]
  %s2 = inlined_call_operand.vmem [shape: f32[1,32], index: 2, kind: input, shape index: {}]
  %s3 = inlined_call_operand.vmem [shape: bf16[32,32], index: 3, kind: input, shape index: {}]
  %s4 = inlined_call_operand.vmem [shape: f32[1,32], index: 4, kind: input, shape index: {}]
  %s5 = inlined_call_operand.vmem [shape: bf16[64,64], index: 5, kind: input, shape index: {}]
  %s6 = inlined_call_operand.vmem [shape: f32[1,64], index: 6, kind: input, shape index: {}]
  %s7 = inlined_call_operand.vmem [shape: bf16[64,32], index: 7, kind: input, shape index: {}]
  %s8 = inlined_call_operand.vmem [shape: f32[1,32], index: 8, kind: input, shape index: {}]
  %s9 = inlined_call_operand.hbm [shape: f32[2,2,1,32], index: 9, kind: output, shape index: {}]
  %s10 = sld [smem:[#allocation0]]
  $region77: #{forward.3} parent=0
    _
  %s12 = ssub.s32 1, %s10
  %s13 = scalar_select 0, %s12, %s10
  $region1: #{forward.3} parent=0
    #allocation3 [shape = 'u8[1024]{0}', space=vmem, size = 0x400, scoped, tag = 'output window, operand 0']
    #allocation4 [shape = 's32[2]{0}', space=sflag, size = 0x8, scoped, tag = 'scoped memory for forward.3']
    %14 = vsyncpa [#allocation4], 0
    %s15 = scalar_lea.sflag [#allocation4], 1
    %16 = vsyncpa %s15, 0
    loop: start=0, step=1, limit=6
    $region2: #{forward.3} parent=1 // loop_pre_header
      _
    $region3: #{forward.3} parent=1 // loop_header
      %s18 = sphi 0, %s22
      %p19 = scmp.ge.s32.totalorder %s18, 6
      %s25 = sphi 0, %s37
      %s26 = sphi 0, %s33
      %s27 = sphi 0, %s25
      %s28 = sphi 0, %s26
      %s29 = sphi 0, %s27
      %s30 = sphi 0, %s28
      %s40 = sphi 0, %s42
      %s43 = sphi 0, %s40
      %s44 = sphi 0, %s43
      %s60 = sphi 0, %s44
      %s64 = sphi 0, %s64
      %s66 = sphi 0, %s64
      %s67 = sphi 0, %s66
      %s81 = sphi 0, %s67
      %s85 = sphi 0, %s85
      %s87 = sphi 0, %s85
      %s88 = sphi 0, %s87
      %s102 = sphi 0, %s88
      %s106 = sphi 0, %s106
      %s108 = sphi 0, %s106
      %s109 = sphi 0, %s108
      %s123 = sphi 0, %s109
      %s127 = sphi 0, %s127
      %s129 = sphi 0, %s127
      %s130 = sphi 0, %s129
      %s144 = sphi 0, %s130
      %s148 = sphi 0, %s148
      %s150 = sphi 0, %s148
      %s151 = sphi 0, %s150
      %s165 = sphi 0, %s151
      %s169 = sphi 0, %s169
      %s171 = sphi 0, %s169
      %s172 = sphi 0, %s171
      %s186 = sphi 0, %s172
      %s190 = sphi 0, %s190
      %s192 = sphi 0, %s190
      %s193 = sphi 0, %s192
      %s207 = sphi 0, %s193
      %s211 = sphi 0, %s211
      %s213 = sphi 0, %s211
      %s214 = sphi 0, %s213
      %s228 = sphi 0, %s214
      %s236 = sphi 0, %s238
      %s239 = sphi 0, %s236
      %s240 = sphi 0, %s239
      %s256 = sphi 0, %s240
    $region4: #{forward.3} parent=1 // loop_header_branch
      %21 = sbr.rel (%p19) target = $region8
    $region5: #{forward.3} parent=1 // loop_body
      %s23 = ssub.s32 %s18, 1
      %s24 = ssub.s32 %s18, 2
      %s31 = sadd.s32 1, %s26
      %p32 = scmp.ge.s32.totalorder %s31, 2
      %s33 = scalar_select %p32, 0, %s31
      %s34 = sadd.s32 1, %s25
      %s35 = scalar_select %p32, %s34, %s25
      %p36 = scmp.ge.s32.totalorder %s35, 2
      %s37 = scalar_select %p36, 0, %s35
      %s38 = ssub.s32 %s25, %s37
      %p39 = scmp.eq.s32.totalorder %s38, 0
      %s41 = sadd.s32 %s40, 1
      %s42 = scalar_select %p39, %s40, %s41
      %p45 = pneg %p39
      %p46 = scmp.eq.s32.totalorder %s18, 3
      %p47 = por %p45, %p46
      %p48 = scmp.ne.s32.totalorder %s40, %s43
      %p49 = scmp.eq.s32.totalorder %s18, 0
      %p50 = por %p48, %p49
      %p51 = scmp.ne.s32.totalorder %s40, %s43
      %p52 = scmp.eq.s32.totalorder %s23, 3
      %p53 = por %p51, %p52
      %p54 = scmp.ne.s32.totalorder %s43, %s44
      %p55 = scmp.eq.s32.totalorder %s23, 0
      %p56 = por %p54, %p55
      %p57 = scmp.ne.s32.totalorder %s43, %s44
      %p58 = scmp.eq.s32.totalorder %s24, 3
      %p59 = por %p57, %p58
      %p61 = scmp.ne.s32.totalorder %s44, %s60
      %p62 = scmp.eq.s32.totalorder %s24, 0
      %p63 = por %p61, %p62
      %s65 = sadd.s32 %s64, 1
      %p68 = scmp.eq.s32.totalorder %s18, 3
      %p69 = scmp.ne.s32.totalorder %s64, %s66
      %p70 = scmp.eq.s32.totalorder %s18, 0
      %p71 = por %p69, %p70
      %p72 = scmp.ne.s32.totalorder %s64, %s66
      %p73 = scmp.eq.s32.totalorder %s23, 3
      %p74 = por %p72, %p73
      %p75 = scmp.ne.s32.totalorder %s66, %s67
      %p76 = scmp.eq.s32.totalorder %s23, 0
      %p77 = por %p75, %p76
      %p78 = scmp.ne.s32.totalorder %s66, %s67
      %p79 = scmp.eq.s32.totalorder %s24, 3
      %p80 = por %p78, %p79
      %p82 = scmp.ne.s32.totalorder %s67, %s81
      %p83 = scmp.eq.s32.totalorder %s24, 0
      %p84 = por %p82, %p83
      %s86 = sadd.s32 %s85, 1
      %p89 = scmp.eq.s32.totalorder %s18, 3
      %p90 = scmp.ne.s32.totalorder %s85, %s87
      %p91 = scmp.eq.s32.totalorder %s18, 0
      %p92 = por %p90, %p91
      %p93 = scmp.ne.s32.totalorder %s85, %s87
      %p94 = scmp.eq.s32.totalorder %s23, 3
      %p95 = por %p93, %p94
      %p96 = scmp.ne.s32.totalorder %s87, %s88
      %p97 = scmp.eq.s32.totalorder %s23, 0
      %p98 = por %p96, %p97
      %p99 = scmp.ne.s32.totalorder %s87, %s88
      %p100 = scmp.eq.s32.totalorder %s24, 3
      %p101 = por %p99, %p100
      %p103 = scmp.ne.s32.totalorder %s88, %s102
      %p104 = scmp.eq.s32.totalorder %s24, 0
      %p105 = por %p103, %p104
      %s107 = sadd.s32 %s106, 1
      %p110 = scmp.eq.s32.totalorder %s18, 3
      %p111 = scmp.ne.s32.totalorder %s106, %s108
      %p112 = scmp.eq.s32.totalorder %s18, 0
      %p113 = por %p111, %p112
      %p114 = scmp.ne.s32.totalorder %s106, %s108
      %p115 = scmp.eq.s32.totalorder %s23, 3
      %p116 = por %p114, %p115
      %p117 = scmp.ne.s32.totalorder %s108, %s109
      %p118 = scmp.eq.s32.totalorder %s23, 0
      %p119 = por %p117, %p118
      %p120 = scmp.ne.s32.totalorder %s108, %s109
      %p121 = scmp.eq.s32.totalorder %s24, 3
      %p122 = por %p120, %p121
      %p124 = scmp.ne.s32.totalorder %s109, %s123
      %p125 = scmp.eq.s32.totalorder %s24, 0
      %p126 = por %p124, %p125
      %s128 = sadd.s32 %s127, 1
      %p131 = scmp.eq.s32.totalorder %s18, 3
      %p132 = scmp.ne.s32.totalorder %s127, %s129
      %p133 = scmp.eq.s32.totalorder %s18, 0
      %p134 = por %p132, %p133
      %p135 = scmp.ne.s32.totalorder %s127, %s129
      %p136 = scmp.eq.s32.totalorder %s23, 3
      %p137 = por %p135, %p136
      %p138 = scmp.ne.s32.totalorder %s129, %s130
      %p139 = scmp.eq.s32.totalorder %s23, 0
      %p140 = por %p138, %p139
      %p141 = scmp.ne.s32.totalorder %s129, %s130
      %p142 = scmp.eq.s32.totalorder %s24, 3
      %p143 = por %p141, %p142
      %p145 = scmp.ne.s32.totalorder %s130, %s144
      %p146 = scmp.eq.s32.totalorder %s24, 0
      %p147 = por %p145, %p146
      %s149 = sadd.s32 %s148, 1
      %p152 = scmp.eq.s32.totalorder %s18, 3
      %p153 = scmp.ne.s32.totalorder %s148, %s150
      %p154 = scmp.eq.s32.totalorder %s18, 0
      %p155 = por %p153, %p154
      %p156 = scmp.ne.s32.totalorder %s148, %s150
      %p157 = scmp.eq.s32.totalorder %s23, 3
      %p158 = por %p156, %p157
      %p159 = scmp.ne.s32.totalorder %s150, %s151
      %p160 = scmp.eq.s32.totalorder %s23, 0
      %p161 = por %p159, %p160
      %p162 = scmp.ne.s32.totalorder %s150, %s151
      %p163 = scmp.eq.s32.totalorder %s24, 3
      %p164 = por %p162, %p163
      %p166 = scmp.ne.s32.totalorder %s151, %s165
      %p167 = scmp.eq.s32.totalorder %s24, 0
      %p168 = por %p166, %p167
      %s170 = sadd.s32 %s169, 1
      %p173 = scmp.eq.s32.totalorder %s18, 3
      %p174 = scmp.ne.s32.totalorder %s169, %s171
      %p175 = scmp.eq.s32.totalorder %s18, 0
      %p176 = por %p174, %p175
      %p177 = scmp.ne.s32.totalorder %s169, %s171
      %p178 = scmp.eq.s32.totalorder %s23, 3
      %p179 = por %p177, %p178
      %p180 = scmp.ne.s32.totalorder %s171, %s172
      %p181 = scmp.eq.s32.totalorder %s23, 0
      %p182 = por %p180, %p181
      %p183 = scmp.ne.s32.totalorder %s171, %s172
      %p184 = scmp.eq.s32.totalorder %s24, 3
      %p185 = por %p183, %p184
      %p187 = scmp.ne.s32.totalorder %s172, %s186
      %p188 = scmp.eq.s32.totalorder %s24, 0
      %p189 = por %p187, %p188
      %s191 = sadd.s32 %s190, 1
      %p194 = scmp.eq.s32.totalorder %s18, 3
      %p195 = scmp.ne.s32.totalorder %s190, %s192
      %p196 = scmp.eq.s32.totalorder %s18, 0
      %p197 = por %p195, %p196
      %p198 = scmp.ne.s32.totalorder %s190, %s192
      %p199 = scmp.eq.s32.totalorder %s23, 3
      %p200 = por %p198, %p199
      %p201 = scmp.ne.s32.totalorder %s192, %s193
      %p202 = scmp.eq.s32.totalorder %s23, 0
      %p203 = por %p201, %p202
      %p204 = scmp.ne.s32.totalorder %s192, %s193
      %p205 = scmp.eq.s32.totalorder %s24, 3
      %p206 = por %p204, %p205
      %p208 = scmp.ne.s32.totalorder %s193, %s207
      %p209 = scmp.eq.s32.totalorder %s24, 0
      %p210 = por %p208, %p209
      %s212 = sadd.s32 %s211, 1
      %p215 = scmp.eq.s32.totalorder %s18, 3
      %p216 = scmp.ne.s32.totalorder %s211, %s213
      %p217 = scmp.eq.s32.totalorder %s18, 0
      %p218 = por %p216, %p217
      %p219 = scmp.ne.s32.totalorder %s211, %s213
      %p220 = scmp.eq.s32.totalorder %s23, 3
      %p221 = por %p219, %p220
      %p222 = scmp.ne.s32.totalorder %s213, %s214
      %p223 = scmp.eq.s32.totalorder %s23, 0
      %p224 = por %p222, %p223
      %p225 = scmp.ne.s32.totalorder %s213, %s214
      %p226 = scmp.eq.s32.totalorder %s24, 3
      %p227 = por %p225, %p226
      %p229 = scmp.ne.s32.totalorder %s214, %s228
      %p230 = scmp.eq.s32.totalorder %s24, 0
      %p231 = por %p229, %p230
      %s232 = ssub.s32 %s25, %s37
      %s233 = ssub.s32 %s26, %s33
      %s234 = sor.u32 %s232, %s233
      %p235 = scmp.eq.s32.totalorder %s234, 0
      %s237 = sadd.s32 %s236, 1
      %s238 = scalar_select %p235, %s236, %s237
      %p241 = pneg %p235
      %p242 = scmp.eq.s32.totalorder %s18, 3
      %p243 = por %p241, %p242
      %p244 = scmp.ne.s32.totalorder %s236, %s239
      %p245 = scmp.eq.s32.totalorder %s18, 0
      %p246 = por %p244, %p245
      %p247 = scmp.ne.s32.totalorder %s236, %s239
      %p248 = scmp.eq.s32.totalorder %s23, 3
      %p249 = por %p247, %p248
      %p250 = scmp.ne.s32.totalorder %s239, %s240
      %p251 = scmp.eq.s32.totalorder %s23, 0
      %p252 = por %p250, %p251
      %p253 = scmp.ne.s32.totalorder %s239, %s240
      %p254 = scmp.eq.s32.totalorder %s24, 3
      %p255 = por %p253, %p254
      %p257 = scmp.ne.s32.totalorder %s240, %s256
      %p258 = scmp.eq.s32.totalorder %s24, 0
      %p259 = por %p257, %p258
      %p260 = scmp.le.s32.totalorder 1, %s18
      %p261 = scmp.lt.s32.totalorder %s18, 5
      %p262 = pnand %p260, %p261
      %p263 = pneg %p262
      // Predicated region
      $region9: #{forward.3} parent=5 // pred_check
        _
      $region10: #{forward.3} parent=5 // pred_check_branch
        %265 = sbr.rel (%p262) target = $region12
      $region11: #{forward.3} parent=5 // pred_region
        %s266 = ssub.s32 %s18, 1
        // Predicated region
        $region13: #{forward.3} parent=11 // pred_check
          %p267 = pneg %p77
        $region14: #{forward.3} parent=11 // pred_check_branch
          %269 = sbr.rel (%p267) target = $region16
        $region15: #{forward.3} parent=11 // pred_region
          _
        $region16: #{forward.3} parent=11 // pred_fallthru
          _
        // Predicated region
        $region17: #{forward.3} parent=11 // pred_check
          %p270 = pneg %p98
        $region18: #{forward.3} parent=11 // pred_check_branch
          %272 = sbr.rel (%p270) target = $region20
        $region19: #{forward.3} parent=11 // pred_region
          _
        $region20: #{forward.3} parent=11 // pred_fallthru
          _
        // Predicated region
        $region21: #{forward.3} parent=11 // pred_check
          %p273 = pneg %p119
        $region22: #{forward.3} parent=11 // pred_check_branch
          %275 = sbr.rel (%p273) target = $region24
        $region23: #{forward.3} parent=11 // pred_region
          _
        $region24: #{forward.3} parent=11 // pred_fallthru
          _
        // Predicated region
        $region25: #{forward.3} parent=11 // pred_check
          %p276 = pneg %p140
        $region26: #{forward.3} parent=11 // pred_check_branch
          %278 = sbr.rel (%p276) target = $region28
        $region27: #{forward.3} parent=11 // pred_region
          _
        $region28: #{forward.3} parent=11 // pred_fallthru
          _
        // Predicated region
        $region29: #{forward.3} parent=11 // pred_check
          %p279 = pneg %p161
        $region30: #{forward.3} parent=11 // pred_check_branch
          %281 = sbr.rel (%p279) target = $region32
        $region31: #{forward.3} parent=11 // pred_region
          _
        $region32: #{forward.3} parent=11 // pred_fallthru
          _
        // Predicated region
        $region33: #{forward.3} parent=11 // pred_check
          %p282 = pneg %p182
        $region34: #{forward.3} parent=11 // pred_check_branch
          %284 = sbr.rel (%p282) target = $region36
        $region35: #{forward.3} parent=11 // pred_region
          _
        $region36: #{forward.3} parent=11 // pred_fallthru
          _
        // Predicated region
        $region37: #{forward.3} parent=11 // pred_check
          %p285 = pneg %p203
        $region38: #{forward.3} parent=11 // pred_check_branch
          %287 = sbr.rel (%p285) target = $region40
        $region39: #{forward.3} parent=11 // pred_region
          _
        $region40: #{forward.3} parent=11 // pred_fallthru
          _
        // Predicated region
        $region41: #{forward.3} parent=11 // pred_check
          %p288 = pneg %p224
        $region42: #{forward.3} parent=11 // pred_check_branch
          %290 = sbr.rel (%p288) target = $region44
        $region43: #{forward.3} parent=11 // pred_region
          _
        $region44: #{forward.3} parent=11 // pred_fallthru
          _
      $region12: #{forward.3} parent=5 // pred_fallthru
        _
      %p291 = scmp.lt.s32.totalorder %s18, 4
      // Predicated region
      $region45: #{forward.3} parent=5 // pred_check
        %p292 = pneg %p291
      $region46: #{forward.3} parent=5 // pred_check_branch
        %294 = sbr.rel (%p292) target = $region48
      $region47: #{forward.3} parent=5 // pred_region
        // Predicated region
        $region49: #{forward.3} parent=47 // pred_check
          %p295 = pneg %p50
        $region50: #{forward.3} parent=47 // pred_check_branch
          %297 = sbr.rel (%p295) target = $region52
        $region51: #{forward.3} parent=47 // pred_region
          %p298 = scmp.lt.s32.totalorder %s25, 1
          %s299 = scalar_select %p298, %s25, 1
          %s300 = scalar_lea.vmem %s0, %s299
        $region52: #{forward.3} parent=47 // pred_fallthru
          _
      $region48: #{forward.3} parent=5 // pred_fallthru
        _
      %p301 = scmp.le.s32.totalorder 1, %s18
      %p302 = scmp.lt.s32.totalorder %s18, 5
      %p303 = pnand %p301, %p302
      %p304 = pneg %p303
      // Predicated region
      $region53: #{forward.3} parent=5 // pred_check
        _
      $region54: #{forward.3} parent=5 // pred_check_branch
        %306 = sbr.rel (%p303) target = $region56
      $region55: #{forward.3} parent=5 // pred_region
        %s307 = ssub.s32 %s18, 1
        %p308 = scmp.lt.s32.totalorder %s27, 1
        %s309 = scalar_select %p308, %s27, 1
        %s310 = scalar_lea.vmem %s0, %s309
        %p311 = pneg %p56
        %p312 = pneg %p53
        %p313 = pneg %p77
        %p314 = pneg %p74
        %p315 = pneg %p98
        %p316 = pneg %p95
        %p317 = pneg %p119
        %p318 = pneg %p116
        %p319 = pneg %p140
        %p320 = pneg %p137
        %p321 = pneg %p161
        %p322 = pneg %p158
        %p323 = pneg %p182
        %p324 = pneg %p179
        %p325 = pneg %p203
        %p326 = pneg %p200
        %p327 = pneg %p224
        %p328 = pneg %p221
        %p329 = pneg %p252
        %p330 = pneg %p249
        %s331 = sand.u32 %s239, 1
        %s332 = scalar_lea.sflag [#allocation4], %s331
        %s333 = sand.u32 %s239, 1
        %s334 = scalar_lea.vmem [#allocation3], %s333
        %p335 = scmp.lt.s32.totalorder %s27, 1
        %s336 = scalar_select %p335, %s27, 1
        %s337 = scalar_lea.vmem %s0, %s336
        %p339 = scmp.eq.s32.totalorder %s28, 0
        // Predicated region
        $region57: #{forward.3} parent=55 // pred_check
          %p340 = pneg %p339
        $region58: #{forward.3} parent=55 // pred_check_branch
          %342 = sbr.rel (%p340) target = $region60
        $region59: #{forward.3} parent=55 // pred_region
          %v343 = vld [vmem:[%s337] sm:$0x1]
          %vm344 = vcmask 253952
          %345 = vst.msk [vmem:[#allocation2] sm:$0x1] %vm344, %v343
        $region60: #{forward.3} parent=55 // pred_fallthru
          _
        %v346 = vld [vmem:[#allocation2] sm:$0x1]
        %v347 = vpack.c.bf16 %v346, %v346
        %v348 = vld [vmem:[%s1] sm:$0xf]
        %v349 = vld [vmem:[%s1 + $0x4] sm:$0xf]
        %v350 = vld [vmem:[%s1 + $0x8] sm:$0xf]
        %v351 = vld [vmem:[%s1 + $0xc] sm:$0xf]
        %v352 = vld [vmem:[%s2] sm:$0x1]
        %v357 = vunpack.c.l.b16 %v348
        %v358 = vunpack.c.l.b16 %v349
        %v359 = vunpack.c.l.b16 %v350
        %v360 = vunpack.c.l.b16 %v351
        %v361 = vpack.c.b16 %v358, %v357
        %v362 = vpack.c.b16 %v360, %v359
        %vm365 = vcmask 261120
        %v367 = vsel %vm365, %v347, 0
        %369 = vmatprep.subr.bf16.mxu0 0
        %370 = vmatpush1.bf16.msra.mxu0 %v361
        %371 = vmatprep.subr.bf16.mxu0 0
        %372 = vmatpush1.bf16.msra.mxu0 %v362
        %373 = vmatprep.subr.bf16.mxu0 0
        %374 = vmatpush1.bf16.msra.mxu0 0
        %375 = vmatprep.subr.bf16.mxu0 0
        %376 = vmatpush1.bf16.msra.mxu0 0
        %377 = vmatprep.subr.bf16.mxu0 0
        %378 = vmatpush1.bf16.msra.mxu0 0
        %379 = vmatprep.subr.bf16.mxu0 0
        %380 = vmatpush1.bf16.msra.mxu0 0
        %381 = vmatprep.subr.bf16.mxu0 0
        %382 = vmatpush1.bf16.msra.mxu0 0
        %383 = vmatprep.subr.bf16.mxu0 0
        %384 = vmatpush1.bf16.msra.mxu0 0
        %385 = vmatprep.subr.bf16.mxu0 0
        %386 = vmatpush1.bf16.msra.mxu0 0
        %387 = vmatprep.subr.bf16.mxu0 0
        %388 = vmatpush1.bf16.msra.mxu0 0
        %389 = vmatprep.subr.bf16.mxu0 0
        %390 = vmatpush1.bf16.msra.mxu0 0
        %391 = vmatprep.subr.bf16.mxu0 0
        %392 = vmatpush1.bf16.msra.mxu0 0
        %393 = vmatprep.subr.bf16.mxu0 0
        %394 = vmatpush1.bf16.msra.mxu0 0
        %395 = vmatprep.subr.bf16.mxu0 0
        %396 = vmatpush1.bf16.msra.mxu0 0
        %397 = vmatprep.subr.bf16.mxu0 0
        %398 = vmatpush1.bf16.msra.mxu0 0
        %399 = vmatprep.subr.bf16.mxu0 0
        %400 = vmatpush1.bf16.msra.mxu0 0
        %401 = vmatprep.mubr.bf16.mxu0 0
        %402 = vmatmul.mubr.bf16.gmra.mrb[0].mxu0 %v367
        %v403 = vpop.f32.mrb[0].mxu0
        %v404 = vadd.f32 %v352, %v403
        %v405 = vpop.f32.mrb[0].mxu0
        %v406 = vpop.f32.mrb[0].mxu0
        %v407 = vpop.f32.mrb[0].mxu0
        %408 = vdwg.mxu0
        %v409 = vmax.f32 %v404, 0.0
        %v410 = vpack.c.bf16 %v409, %v409
        %v411 = vld [vmem:[%s3] sm:$0xf]
        %v412 = vld [vmem:[%s3 + $0x4] sm:$0xf]
        %v413 = vld [vmem:[%s3 + $0x8] sm:$0xf]
        %v414 = vld [vmem:[%s3 + $0xc] sm:$0xf]
        %v415 = vld [vmem:[%s4] sm:$0x1]
        %v420 = vunpack.c.l.b16 %v411
        %v421 = vunpack.c.l.b16 %v412
        %v422 = vunpack.c.l.b16 %v413
        %v423 = vunpack.c.l.b16 %v414
        %v424 = vpack.c.b16 %v421, %v420
        %v425 = vpack.c.b16 %v423, %v422
        %v429 = vsel %vm365, %v410, 0
        %431 = vmatprep.subr.bf16.mxu0 0
        %432 = vmatpush1.bf16.msra.mxu0 %v424
        %433 = vmatprep.subr.bf16.mxu0 0
        %434 = vmatpush1.bf16.msra.mxu0 %v425
        %435 = vmatprep.subr.bf16.mxu0 0
        %436 = vmatpush1.bf16.msra.mxu0 0
        %437 = vmatprep.subr.bf16.mxu0 0
        %438 = vmatpush1.bf16.msra.mxu0 0
        %439 = vmatprep.subr.bf16.mxu0 0
        %440 = vmatpush1.bf16.msra.mxu0 0
        %441 = vmatprep.subr.bf16.mxu0 0
        %442 = vmatpush1.bf16.msra.mxu0 0
        %443 = vmatprep.subr.bf16.mxu0 0
        %444 = vmatpush1.bf16.msra.mxu0 0
        %445 = vmatprep.subr.bf16.mxu0 0
        %446 = vmatpush1.bf16.msra.mxu0 0
        %447 = vmatprep.subr.bf16.mxu0 0
        %448 = vmatpush1.bf16.msra.mxu0 0
        %449 = vmatprep.subr.bf16.mxu0 0
        %450 = vmatpush1.bf16.msra.mxu0 0
        %451 = vmatprep.subr.bf16.mxu0 0
        %452 = vmatpush1.bf16.msra.mxu0 0
        %453 = vmatprep.subr.bf16.mxu0 0
        %454 = vmatpush1.bf16.msra.mxu0 0
        %455 = vmatprep.subr.bf16.mxu0 0
        %456 = vmatpush1.bf16.msra.mxu0 0
        %457 = vmatprep.subr.bf16.mxu0 0
        %458 = vmatpush1.bf16.msra.mxu0 0
        %459 = vmatprep.subr.bf16.mxu0 0
        %460 = vmatpush1.bf16.msra.mxu0 0
        %461 = vmatprep.subr.bf16.mxu0 0
        %462 = vmatpush1.bf16.msra.mxu0 0
        %463 = vmatprep.mubr.bf16.mxu0 0
        %464 = vmatmul.mubr.bf16.gmra.mrb[0].mxu0 %v429
        %v465 = vpop.f32.mrb[0].mxu0
        %v466 = vadd.f32 %v415, %v465
        %v467 = vpop.f32.mrb[0].mxu0
        %v468 = vpop.f32.mrb[0].mxu0
        %v469 = vpop.f32.mrb[0].mxu0
        %470 = vdwg.mxu0
        %vm471 = vcmask 253952
        %472 = vst.msk [vmem:[%s334] sm:$0x1] %vm471, %v466
        %s473 = sadd.s32 %s28, 1
        %p474 = scmp.lt.s32.totalorder %s473, 2
        // Predicated region
        $region61: #{forward.3} parent=55 // pred_check
          %p475 = pneg %p474
        $region62: #{forward.3} parent=55 // pred_check_branch
          %477 = sbr.rel (%p475) target = $region64
        $region63: #{forward.3} parent=55 // pred_region
          %v478 = vmax.f32 %v466, 0.0
          %v480 = vlaneseq
          %v481 = vshrl.u32 %v480, 7
          %v482 = vsub.s32 0, %v481
          %v483 = vrot.slane %v346, %v482
          %484 = vrot.lane.b32.xlu0 %v483, 32
          %v485 = vpop.permute.xlu0 %484
          %v487 = vsel %vm365, %v478, %v485
          %v488 = vpack.c.bf16 %v487, %v487
          %v489 = vld [vmem:[%s5] sm:$0xf]
          %v490 = vld [vmem:[%s5 + $0x4] sm:$0xf]
          %v491 = vld [vmem:[%s5 + $0x8] sm:$0xf]
          %v492 = vld [vmem:[%s5 + $0xc] sm:$0xf]
          %v493 = vld [vmem:[%s5 + $0x10] sm:$0xf]
          %v494 = vld [vmem:[%s5 + $0x14] sm:$0xf]
          %v495 = vld [vmem:[%s5 + $0x18] sm:$0xf]
          %v496 = vld [vmem:[%s5 + $0x1c] sm:$0xf]
          %v497 = vld [vmem:[%s6] sm:$0x1]
          %v506 = vunpack.c.l.b16 %v489
          %v507 = vunpack.c.l.b16 %v490
          %v508 = vunpack.c.l.b16 %v491
          %v509 = vunpack.c.l.b16 %v492
          %v510 = vunpack.c.l.b16 %v493
          %v511 = vunpack.c.l.b16 %v494
          %v512 = vunpack.c.l.b16 %v495
          %v513 = vunpack.c.l.b16 %v496
          %v514 = vpack.c.b16 %v507, %v506
          %v515 = vpack.c.b16 %v509, %v508
          %v516 = vpack.c.b16 %v511, %v510
          %v517 = vpack.c.b16 %v513, %v512
          %vm522 = vcmask 523264
          %v524 = vsel %vm522, %v488, 0
          %526 = vmatprep.subr.bf16.mxu0 0
          %527 = vmatpush1.bf16.msra.mxu0 %v514
          %528 = vmatprep.subr.bf16.mxu0 0
          %529 = vmatpush1.bf16.msra.mxu0 %v515
          %530 = vmatprep.subr.bf16.mxu0 0
          %531 = vmatpush1.bf16.msra.mxu0 %v516
          %532 = vmatprep.subr.bf16.mxu0 0
          %533 = vmatpush1.bf16.msra.mxu0 %v517
          %534 = vmatprep.subr.bf16.mxu0 0
          %535 = vmatpush1.bf16.msra.mxu0 0
          %536 = vmatprep.subr.bf16.mxu0 0
          %537 = vmatpush1.bf16.msra.mxu0 0
          %538 = vmatprep.subr.bf16.mxu0 0
          %539 = vmatpush1.bf16.msra.mxu0 0
          %540 = vmatprep.subr.bf16.mxu0 0
          %541 = vmatpush1.bf16.msra.mxu0 0
          %542 = vmatprep.subr.bf16.mxu0 0
          %543 = vmatpush1.bf16.msra.mxu0 0
          %544 = vmatprep.subr.bf16.mxu0 0
          %545 = vmatpush1.bf16.msra.mxu0 0
          %546 = vmatprep.subr.bf16.mxu0 0
          %547 = vmatpush1.bf16.msra.mxu0 0
          %548 = vmatprep.subr.bf16.mxu0 0
          %549 = vmatpush1.bf16.msra.mxu0 0
          %550 = vmatprep.subr.bf16.mxu0 0
          %551 = vmatpush1.bf16.msra.mxu0 0
          %552 = vmatprep.subr.bf16.mxu0 0
          %553 = vmatpush1.bf16.msra.mxu0 0
          %554 = vmatprep.subr.bf16.mxu0 0
          %555 = vmatpush1.bf16.msra.mxu0 0
          %556 = vmatprep.subr.bf16.mxu0 0
          %557 = vmatpush1.bf16.msra.mxu0 0
          %558 = vmatprep.mubr.bf16.mxu0 0
          %559 = vmatmul.mubr.bf16.gmra.mrb[0].mxu0 %v524
          %v560 = vpop.f32.mrb[0].mxu0
          %v561 = vadd.f32 %v497, %v560
          %v562 = vpop.f32.mrb[0].mxu0
          %v563 = vpop.f32.mrb[0].mxu0
          %v564 = vpop.f32.mrb[0].mxu0
          %565 = vdwg.mxu0
          %v566 = vxor.u32 %v561, 2147483648
          %v567 = vmul.f32 %v566, 1.442695
          %v568 = vpow.pop %v567
          %v569 = vadd.f32 %v568, 1.0
          %v570 = vrcp.pop %v569
          %v571 = vmul.f32 1.0, %v570
          %v572 = vmul.f32 %v346, %v571
          %v574 = vlaneseq
          %v575 = vshrl.u32 %v574, 7
          %v576 = vsub.s32 0, %v575
          %v577 = vrot.slane %v572, %v576
          %578 = vrot.lane.b32.xlu0 %v577, 32
          %v579 = vpop.permute.xlu0 %578
          %v581 = vsel %vm365, %v478, %v579
          %v582 = vpack.c.bf16 %v581, %v581
          %v583 = vld [vmem:[%s7] sm:$0xf]
          %v584 = vld [vmem:[%s7 + $0x4] sm:$0xf]
          %v585 = vld [vmem:[%s7 + $0x8] sm:$0xf]
          %v586 = vld [vmem:[%s7 + $0xc] sm:$0xf]
          %v587 = vld [vmem:[%s7 + $0x10] sm:$0xf]
          %v588 = vld [vmem:[%s7 + $0x14] sm:$0xf]
          %v589 = vld [vmem:[%s7 + $0x18] sm:$0xf]
          %v590 = vld [vmem:[%s7 + $0x1c] sm:$0xf]
          %v591 = vld [vmem:[%s8] sm:$0x1]
          %v600 = vunpack.c.l.b16 %v583
          %v601 = vunpack.c.l.b16 %v584
          %v602 = vunpack.c.l.b16 %v585
          %v603 = vunpack.c.l.b16 %v586
          %v604 = vunpack.c.l.b16 %v587
          %v605 = vunpack.c.l.b16 %v588
          %v606 = vunpack.c.l.b16 %v589
          %v607 = vunpack.c.l.b16 %v590
          %v608 = vpack.c.b16 %v601, %v600
          %v609 = vpack.c.b16 %v603, %v602
          %v610 = vpack.c.b16 %v605, %v604
          %v611 = vpack.c.b16 %v607, %v606
          %v617 = vsel %vm522, %v582, 0
          %619 = vmatprep.subr.bf16.mxu0 0
          %620 = vmatpush1.bf16.msra.mxu0 %v608
          %621 = vmatprep.subr.bf16.mxu0 0
          %622 = vmatpush1.bf16.msra.mxu0 %v609
          %623 = vmatprep.subr.bf16.mxu0 0
          %624 = vmatpush1.bf16.msra.mxu0 %v610
          %625 = vmatprep.subr.bf16.mxu0 0
          %626 = vmatpush1.bf16.msra.mxu0 %v611
          %627 = vmatprep.subr.bf16.mxu0 0
          %628 = vmatpush1.bf16.msra.mxu0 0
          %629 = vmatprep.subr.bf16.mxu0 0
          %630 = vmatpush1.bf16.msra.mxu0 0
          %631 = vmatprep.subr.bf16.mxu0 0
          %632 = vmatpush1.bf16.msra.mxu0 0
          %633 = vmatprep.subr.bf16.mxu0 0
          %634 = vmatpush1.bf16.msra.mxu0 0
          %635 = vmatprep.subr.bf16.mxu0 0
          %636 = vmatpush1.bf16.msra.mxu0 0
          %637 = vmatprep.subr.bf16.mxu0 0
          %638 = vmatpush1.bf16.msra.mxu0 0
          %639 = vmatprep.subr.bf16.mxu0 0
          %640 = vmatpush1.bf16.msra.mxu0 0
          %641 = vmatprep.subr.bf16.mxu0 0
          %642 = vmatpush1.bf16.msra.mxu0 0
          %643 = vmatprep.subr.bf16.mxu0 0
          %644 = vmatpush1.bf16.msra.mxu0 0
          %645 = vmatprep.subr.bf16.mxu0 0
          %646 = vmatpush1.bf16.msra.mxu0 0
          %647 = vmatprep.subr.bf16.mxu0 0
          %648 = vmatpush1.bf16.msra.mxu0 0
          %649 = vmatprep.subr.bf16.mxu0 0
          %650 = vmatpush1.bf16.msra.mxu0 0
          %651 = vmatprep.mubr.bf16.mxu0 0
          %652 = vmatmul.mubr.bf16.gmra.mrb[0].mxu0 %v617
          %v653 = vpop.f32.mrb[0].mxu0
          %v654 = vadd.f32 %v591, %v653
          %v655 = vpop.f32.mrb[0].mxu0
          %v656 = vpop.f32.mrb[0].mxu0
          %v657 = vpop.f32.mrb[0].mxu0
          %658 = vdwg.mxu0
          %v659 = vtanh.pop %v654
          %v660 = vsub.f32 1.0, %v571
          %v663 = vunpack.c.l.s4 1966171168
          %v664 = vunpack.c.0.s8 %v663
          %v665 = vlaneseq
          %v666 = vshrl.u32 %v665, 7
          %v667 = vsub.s32 %v664, %v666
          %v668 = vrot.slane %v660, %v667
          %v670 = vunpack.c.l.s4 1966171168
          %v671 = vunpack.c.0.s8 %v670
          %v672 = vlaneseq
          %v673 = vshrl.u32 %v672, 7
          %v674 = vsub.s32 %v671, %v673
          %v675 = vrot.slane %v668, %v674
          %676 = vrot.lane.b32.xlu0 %v675, 96
          %v677 = vpop.permute.xlu0 %676
          %v679 = vmul.f32 %v346, %v677
          %681 = vrot.lane.b32.xlu0 %v571, 96
          %v682 = vpop.permute.xlu0 %681
          %v684 = vmul.f32 %v659, %v682
          %v685 = vadd.f32 %v679, %v684
          %686 = vst.msk [vmem:[#allocation2] sm:$0x1] %vm471, %v685
        $region64: #{forward.3} parent=55 // pred_fallthru
          _
        %s687 = sand.u32 %s239, 1
        %s688 = scalar_lea.sflag [#allocation4], %s687
        %s689 = sand.u32 %s239, 1
        %s690 = scalar_lea.vmem [#allocation3], %s689
        // Predicated region
        $region65: #{forward.3} parent=55 // pred_check
          %p691 = pneg %p249
        $region66: #{forward.3} parent=55 // pred_check_branch
          %693 = sbr.rel (%p691) target = $region68
        $region67: #{forward.3} parent=55 // pred_region
          %s695 = ssub.s32 16, 16
          %696 = vsyncadd %s688, %s695
          %s697 = smul.addr %s27, 2
          %s698 = sadd.s32 %s28, %s697
          %s699 = smul.addr %s698, 16
          %s700 = scalar_lea.hbm %s9, %s699
          %s702 = sshll.u32 %s690, 4
          %s703 = int_to_ptr.vmem [resolvable:$true] %s702
          %705 = dma.vmem_to_hbm [thread:$0]  %s703, 16, %s700, %s688
        $region68: #{forward.3} parent=55 // pred_fallthru
          _
      $region56: #{forward.3} parent=5 // pred_fallthru
        _
      %p706 = scmp.le.s32.totalorder 2, %s18
      // Predicated region
      $region69: #{forward.3} parent=5 // pred_check
        %p707 = pneg %p706
      $region70: #{forward.3} parent=5 // pred_check_branch
        %709 = sbr.rel (%p707) target = $region72
      $region71: #{forward.3} parent=5 // pred_region
        %s710 = ssub.s32 %s18, 2
        // Predicated region
        $region73: #{forward.3} parent=71 // pred_check
          %p711 = pneg %p255
        $region74: #{forward.3} parent=71 // pred_check_branch
          %713 = sbr.rel (%p711) target = $region76
        $region75: #{forward.3} parent=71 // pred_region
          %s714 = sand.u32 %s240, 1
          %s715 = scalar_lea.sflag [#allocation4], %s714
          %s716 = sand.u32 %s240, 1
          %s717 = scalar_lea.vmem [#allocation3], %s716
          %718 = dma.done %s715, 16
        $region76: #{forward.3} parent=71 // pred_fallthru
          _
      $region72: #{forward.3} parent=5 // pred_fallthru
        _
    $region6: #{forward.3} parent=1 // loop_footer
      %s22 = sadd.s32 1, %s18
    $region7: #{forward.3} parent=1 // loop_footer_branch
      %17 = sbr.rel target = $region3
    $region8: #{forward.3} parent=1 // loop_exit
      _
    %719 = vsyncpa [#allocation4], 1
    %s720 = scalar_lea.sflag [#allocation4], 1
    %721 = vsyncpa %s720, 1

</llo_original>
